<compile_context>
chip_gen: v6e
topology: v6e:2x2x1
jax: 0.10.0
libtpu: 0.0.40
codegen_flags: <defaults>
</compile_context>

<pallas_src>
import math
from functools import partial

import jax
import jax.numpy as jnp
from jax import lax
from jax.experimental import pallas as pl
from jax.experimental.pallas import tpu as pltpu


def encoder_layer_kernel(
    x_ref, mask_ref,
    wq_ref, bq_ref, wk_ref, bk_ref, wv_ref, bv_ref,
    wo_ref, bo_ref, ln1g_ref, ln1b_ref,
    w1_ref, b1_ref, w2_ref, b2_ref, ln2g_ref, ln2b_ref,
    out_ref, att_ref=None,
    *, n_heads: int, d_k: int,
):
    eps = 1e-5
    L, D = x_ref.shape[1], x_ref.shape[2]
    H = n_heads

    x = x_ref[0]                           # (L, D) f32
    x_bf = x.astype(jnp.bfloat16)
    mask = mask_ref[0]                     # (1, L)
    pad = (mask == 0)                      # hoisted: computed once, reused for all heads

    # ---- QKV projections: bf16 operands on the MXU, f32 accumulation ---------
    q = jnp.dot(x_bf, wq_ref[...], preferred_element_type=jnp.float32) + bq_ref[...]
    k = jnp.dot(x_bf, wk_ref[...], preferred_element_type=jnp.float32) + bk_ref[...]
    v = jnp.dot(x_bf, wv_ref[...], preferred_element_type=jnp.float32) + bv_ref[...]

    inv_scale = 1.0 / math.sqrt(d_k)       # compile-time constant multiply (no divide)

    # Head-batched, transposed layout (H, d_k, L): keeps L on the lane axis
    # (d_k < 128 would waste lanes) and needs only 2-D transposes plus
    # leading-dim reshapes (layout-friendly; no per-head lane slicing).
    qt = (q * inv_scale).T.reshape(H, d_k, L).astype(jnp.bfloat16)   # (H, dk, L)
    kt = k.T.reshape(H, d_k, L).astype(jnp.bfloat16)                 # (H, dk, L)
    vt = v.T.reshape(H, d_k, L).astype(jnp.bfloat16)                 # (H, dk, L)

    # scores[h, i, j] = sum_d qt[h, d, i] * kt[h, d, j]   -> (H, L, L), f32 acc
    s = lax.dot_general(qt, kt, (((1,), (1,)), ((0,), (0,))),
                        preferred_element_type=jnp.float32)
    s = jnp.where(pad[None, :, :], -1e9, s)               # key-padding mask

    # stable softmax; reciprocal on the EUP slot
    s = s - jnp.max(s, axis=-1, keepdims=True)
    p = jnp.exp(s)
    p = p * pl.reciprocal(jnp.sum(p, axis=-1, keepdims=True), approx=True)

    if att_ref is not None:
        att_ref[0] = p.astype(att_ref.dtype)               # (H, L, L)

    # ctxT[h, d, i] = sum_j vt[h, d, j] * p[h, i, j]      -> (H, dk, L)
    ctx_t = lax.dot_general(vt, p.astype(jnp.bfloat16),
                            (((2,), (2,)), ((0,), (0,))),
                            preferred_element_type=jnp.float32)
    ctx = ctx_t.reshape(D, L).T                            # (L, D) f32

    att_out = jnp.dot(ctx.astype(jnp.bfloat16), wo_ref[...],
                      preferred_element_type=jnp.float32) + bo_ref[...]
    att_out = att_out + x                                  # residual (f32)

    # LayerNorm 1 (f32)
    mu = jnp.mean(att_out, axis=-1, keepdims=True)
    var = jnp.mean((att_out - mu) ** 2, axis=-1, keepdims=True)
    h1 = (att_out - mu) * lax.rsqrt(var + eps) * ln1g_ref[...] + ln1b_ref[...]

    # ---- Position-wise feed forward (bf16 matmuls, f32 accumulation) ---------
    f = jnp.dot(h1.astype(jnp.bfloat16), w1_ref[...],
                preferred_element_type=jnp.float32) + b1_ref[...]
    f = jnp.maximum(f, 0.0)                                # ReLU
    f = jnp.dot(f.astype(jnp.bfloat16), w2_ref[...],
                preferred_element_type=jnp.float32) + b2_ref[...]
    f = f + h1                                             # residual

    # LayerNorm 2 (f32)
    mu2 = jnp.mean(f, axis=-1, keepdims=True)
    var2 = jnp.mean((f - mu2) ** 2, axis=-1, keepdims=True)
    out = (f - mu2) * lax.rsqrt(var2 + eps) * ln2g_ref[...] + ln2b_ref[...]

    out_ref[0] = out.astype(out_ref.dtype)


def encoder_layer(x, mask, params, *, n_heads: int, return_att: bool = True):
    """x: (B, L, D) f32, mask: (B, 1, L) f32.
    Returns (out (B,L,D), att (B,H,L,L)) if return_att else out."""
    B, L, D = x.shape
    d_k = D // n_heads
    H = n_heads

    p = dict(params)
    # MXU operands in bf16 (f32 accumulation); biases / LayerNorm params stay f32.
    for name in ("wq", "wk", "wv", "wo", "w1", "w2"):
        p[name] = p[name].astype(jnp.bfloat16)
    for name in ("bq", "bk", "bv", "bo", "ln1g", "ln1b", "b1", "b2", "ln2g", "ln2b"):
        p[name] = p[name].reshape(1, -1).astype(jnp.float32)

    hidden = p["w1"].shape[1]

    def rep(shape):
        # Replicated parameter: block index is constant across the batch grid,
        # so single-buffer it to halve the weight VMEM footprint.
        nd = len(shape)
        return pl.BlockSpec(shape, lambda b: (0,) * nd, pipeline_mode=pl.Buffered(1))

    in_specs = [
        pl.BlockSpec((1, L, D), lambda b: (b, 0, 0)),   # x (pipelined over batch)
        pl.BlockSpec((1, 1, L), lambda b: (b, 0, 0)),   # mask
        rep((D, D)), rep((1, D)),                       # wq, bq
        rep((D, D)), rep((1, D)),                       # wk, bk
        rep((D, D)), rep((1, D)),                       # wv, bv
        rep((D, D)), rep((1, D)),                       # wo, bo
        rep((1, D)), rep((1, D)),                       # ln1 gamma, beta
        rep((D, hidden)), rep((1, hidden)),             # w1, b1
        rep((hidden, D)), rep((1, D)),                  # w2, b2
        rep((1, D)), rep((1, D)),                       # ln2 gamma, beta
    ]

    out_spec_x = pl.BlockSpec((1, L, D), lambda b: (b, 0, 0))
    out_shape_x = jax.ShapeDtypeStruct((B, L, D), jnp.float32)
    if return_att:
        out_specs = (out_spec_x, pl.BlockSpec((1, H, L, L), lambda b: (b, 0, 0, 0)))
        out_shape = (out_shape_x, jax.ShapeDtypeStruct((B, H, L, L), jnp.float32))
    else:
        out_specs = out_spec_x
        out_shape = out_shape_x

    kernel = partial(encoder_layer_kernel, n_heads=H, d_k=d_k)
    return pl.pallas_call(
        kernel,
        out_shape=out_shape,
        grid_spec=pltpu.PrefetchScalarGridSpec(
            num_scalar_prefetch=0,
            grid=(B,),
            in_specs=in_specs,
            out_specs=out_specs,
        ),
        compiler_params=pltpu.CompilerParams(
            dimension_semantics=("parallel",),
            vmem_limit_bytes=64 * 1024 * 1024,
        ),
    )(
        x, mask,
        p["wq"], p["bq"], p["wk"], p["bk"], p["wv"], p["bv"],
        p["wo"], p["bo"], p["ln1g"], p["ln1b"],
        p["w1"], p["b1"], p["w2"], p["b2"], p["ln2g"], p["ln2b"],
    )


# ---------------------------------------------------------------------------
# Pure-JAX f32 reference (mirrors the PyTorch module in eval mode).
# ---------------------------------------------------------------------------
def encoder_layer_ref(x, mask, params, *, n_heads: int):
    B, L, D = x.shape
    d_k = D // n_heads
    eps = 1e-5

    def ln(z, g, b):
        mu = z.mean(-1, keepdims=True)
        var = ((z - mu) ** 2).mean(-1, keepdims=True)
        return (z - mu) / jnp.sqrt(var + eps) * g + b

    q = x @ params["wq"] + params["bq"]
    k = x @ params["wk"] + params["bk"]
    v = x @ params["wv"] + params["bv"]
    q = q.reshape(B, L, n_heads, d_k).transpose(0, 2, 1, 3)
    k = k.reshape(B, L, n_heads, d_k).transpose(0, 2, 1, 3)
    v = v.reshape(B, L, n_heads, d_k).transpose(0, 2, 1, 3)
    s = jnp.einsum("bhqd,bhkd->bhqk", q / math.sqrt(d_k), k)
    s = jnp.where(mask[:, None, :, :] == 0, -1e9, s)
    att = jax.nn.softmax(s, axis=-1)
    ctx = jnp.einsum("bhqk,bhkd->bhqd", att, v).transpose(0, 2, 1, 3).reshape(B, L, D)
    att_out = ln(ctx @ params["wo"] + params["bo"] + x, params["ln1g"], params["ln1b"])
    f = jax.nn.relu(att_out @ params["w1"] + params["b1"]) @ params["w2"] + params["b2"]
    out = ln(f + att_out, params["ln2g"], params["ln2b"])
    return out, att


def init_params(key, d_model, n_heads, hidden_size):
    ks = jax.random.split(key, 8)
    scale = 0.1
    return {
        "wq": scale * jax.random.normal(ks[0], (d_model, d_model), jnp.float32),
        "bq": scale * jax.random.normal(ks[1], (d_model,), jnp.float32),
        "wk": scale * jax.random.normal(ks[2], (d_model, d_model), jnp.float32),
        "bk": scale * jax.random.normal(ks[3], (d_model,), jnp.float32),
        "wv": scale * jax.random.normal(ks[4], (d_model, d_model), jnp.float32),
        "bv": scale * jax.random.normal(ks[5], (d_model,), jnp.float32),
        "wo": scale * jax.random.normal(ks[6], (d_model, d_model), jnp.float32),
        "bo": jnp.zeros((d_model,), jnp.float32),
        "ln1g": jnp.ones((d_model,), jnp.float32),
        "ln1b": jnp.zeros((d_model,), jnp.float32),
        "w1": scale * jax.random.normal(ks[7], (d_model, hidden_size), jnp.float32),
        "b1": jnp.zeros((hidden_size,), jnp.float32),
        "w2": scale * jax.random.normal(jax.random.fold_in(key, 99),
                                        (hidden_size, d_model), jnp.float32),
        "b2": jnp.zeros((d_model,), jnp.float32),
        "ln2g": jnp.ones((d_model,), jnp.float32),
        "ln2b": jnp.zeros((d_model,), jnp.float32),
    }


if __name__ == "__main__":
    B, L, D, H, HID = 2, 8, 32, 4, 64
    key = jax.random.PRNGKey(0)
    kx, kp = jax.random.split(key)

    x = jax.random.normal(kx, (B, L, D), jnp.float32)
    # padding mask (B, 1, L): second example has its last 3 positions padded
    mask = jnp.ones((B, 1, L), jnp.float32)
    mask = mask.at[1, 0, L - 3:].set(0.0)

    params = init_params(kp, D, H, HID)

    out, att = encoder_layer(x, mask, params, n_heads=H)
    out, att = jax.block_until_ready((out, att))

    # att-free variant (skips the O(L^2) attention-weights HBM writeback)
    out_noatt = jax.block_until_ready(
        encoder_layer(x, mask, params, n_heads=H, return_att=False))

    out_ref, att_ref_ = encoder_layer_ref(x, mask, params, n_heads=H)
    assert out.shape == (B, L, D) and att.shape == (B, H, L, L)
    # bf16 MXU operands (f32 accumulation) + approx reciprocal -> relaxed tolerance
    assert jnp.allclose(att, att_ref_, rtol=2e-2, atol=2e-2)
    assert jnp.allclose(out, out_ref, rtol=3e-2, atol=3e-2)
    assert jnp.allclose(out_noatt, out, rtol=1e-5, atol=1e-5)

    print("KERNEL_OK")
</pallas_src>

<mosaic_0001>
module attributes {stable_mosaic.version = 11 : i64} {
  func.func @encoder_layer_kernel(%arg0: i32, %arg1: memref<1x8x32xf32, #tpu.memory_space<vmem>>, %arg2: memref<1x1x8xf32, #tpu.memory_space<vmem>>, %arg3: memref<32x32xbf16, #tpu.memory_space<vmem>>, %arg4: memref<1x32xf32, #tpu.memory_space<vmem>>, %arg5: memref<32x32xbf16, #tpu.memory_space<vmem>>, %arg6: memref<1x32xf32, #tpu.memory_space<vmem>>, %arg7: memref<32x32xbf16, #tpu.memory_space<vmem>>, %arg8: memref<1x32xf32, #tpu.memory_space<vmem>>, %arg9: memref<32x32xbf16, #tpu.memory_space<vmem>>, %arg10: memref<1x32xf32, #tpu.memory_space<vmem>>, %arg11: memref<1x32xf32, #tpu.memory_space<vmem>>, %arg12: memref<1x32xf32, #tpu.memory_space<vmem>>, %arg13: memref<32x64xbf16, #tpu.memory_space<vmem>>, %arg14: memref<1x64xf32, #tpu.memory_space<vmem>>, %arg15: memref<64x32xbf16, #tpu.memory_space<vmem>>, %arg16: memref<1x32xf32, #tpu.memory_space<vmem>>, %arg17: memref<1x32xf32, #tpu.memory_space<vmem>>, %arg18: memref<1x32xf32, #tpu.memory_space<vmem>>, %arg19: memref<1x8x32xf32, #tpu.memory_space<vmem>>, %arg20: memref<1x4x8x8xf32, #tpu.memory_space<vmem>>) attributes {dimension_semantics = [#tpu.dimension_semantics<parallel>], iteration_bounds = array<i64: 2>, scalar_prefetch = 0 : i64, scratch_operands = 0 : i64, tpu.core_type = #tpu.core_type<tc>, window_params = [{transform_indices = @transform_0, window_bounds = array<i64: 1, 8, 32>}, {transform_indices = @transform_1, window_bounds = array<i64: 1, 1, 8>}, {pipeline_mode = #tpu.pipeline_mode<synchronous>, transform_indices = @transform_2, window_bounds = array<i64: 32, 32>}, {pipeline_mode = #tpu.pipeline_mode<synchronous>, transform_indices = @transform_3, window_bounds = array<i64: 1, 32>}, {pipeline_mode = #tpu.pipeline_mode<synchronous>, transform_indices = @transform_4, window_bounds = array<i64: 32, 32>}, {pipeline_mode = #tpu.pipeline_mode<synchronous>, transform_indices = @transform_5, window_bounds = array<i64: 1, 32>}, {pipeline_mode = #tpu.pipeline_mode<synchronous>, transform_indices = @transform_6, window_bounds = array<i64: 32, 32>}, {pipeline_mode = #tpu.pipeline_mode<synchronous>, transform_indices = @transform_7, window_bounds = array<i64: 1, 32>}, {pipeline_mode = #tpu.pipeline_mode<synchronous>, transform_indices = @transform_8, window_bounds = array<i64: 32, 32>}, {pipeline_mode = #tpu.pipeline_mode<synchronous>, transform_indices = @transform_9, window_bounds = array<i64: 1, 32>}, {pipeline_mode = #tpu.pipeline_mode<synchronous>, transform_indices = @transform_10, window_bounds = array<i64: 1, 32>}, {pipeline_mode = #tpu.pipeline_mode<synchronous>, transform_indices = @transform_11, window_bounds = array<i64: 1, 32>}, {pipeline_mode = #tpu.pipeline_mode<synchronous>, transform_indices = @transform_12, window_bounds = array<i64: 32, 64>}, {pipeline_mode = #tpu.pipeline_mode<synchronous>, transform_indices = @transform_13, window_bounds = array<i64: 1, 64>}, {pipeline_mode = #tpu.pipeline_mode<synchronous>, transform_indices = @transform_14, window_bounds = array<i64: 64, 32>}, {pipeline_mode = #tpu.pipeline_mode<synchronous>, transform_indices = @transform_15, window_bounds = array<i64: 1, 32>}, {pipeline_mode = #tpu.pipeline_mode<synchronous>, transform_indices = @transform_16, window_bounds = array<i64: 1, 32>}, {pipeline_mode = #tpu.pipeline_mode<synchronous>, transform_indices = @transform_17, window_bounds = array<i64: 1, 32>}, {transform_indices = @transform_18, window_bounds = array<i64: 1, 8, 32>}, {transform_indices = @transform_19, window_bounds = array<i64: 1, 4, 8, 8>}]} {
    %c0 = arith.constant 0 : index
    %c0_0 = arith.constant 0 : index
    %c0_1 = arith.constant 0 : index
    %0 = vector.load %arg1[%c0, %c0_0, %c0_1] : memref<1x8x32xf32, #tpu.memory_space<vmem>>, vector<1x8x32xf32>
    %1 = vector.shape_cast %0 : vector<1x8x32xf32> to vector<8x32xf32>
    %2 = arith.truncf %1 : vector<8x32xf32> to vector<8x32xbf16>
    %c0_2 = arith.constant 0 : index
    %c0_3 = arith.constant 0 : index
    %c0_4 = arith.constant 0 : index
    %3 = vector.load %arg2[%c0_2, %c0_3, %c0_4] : memref<1x1x8xf32, #tpu.memory_space<vmem>>, vector<1x1x8xf32>
    %4 = vector.shape_cast %3 : vector<1x1x8xf32> to vector<1x8xf32>
    %cst = arith.constant 0.000000e+00 : f32
    %5 = vector.broadcast %cst : f32 to vector<1x8xf32>
    %6 = arith.cmpf oeq, %4, %5 : vector<1x8xf32>
    %c0_5 = arith.constant 0 : index
    %c0_6 = arith.constant 0 : index
    %7 = vector.load %arg3[%c0_5, %c0_6] : memref<32x32xbf16, #tpu.memory_space<vmem>>, vector<32x32xbf16>
    %cst_7 = arith.constant dense<0.000000e+00> : vector<8x32xf32>
    %8 = tpu.matmul %2, %7, %cst_7 {dimension_numbers = #tpu.dot_dimension_numbers<[1], [0], [0], [1], [0, 0, 1, 1], [], []>} : vector<8x32xbf16>, vector<32x32xbf16>, vector<8x32xf32> -> vector<8x32xf32>
    %c0_8 = arith.constant 0 : index
    %c0_9 = arith.constant 0 : index
    %9 = vector.load %arg4[%c0_8, %c0_9] : memref<1x32xf32, #tpu.memory_space<vmem>>, vector<1x32xf32>
    %10 = vector.broadcast %9 : vector<1x32xf32> to vector<8x32xf32>
    %11 = arith.addf %8, %10 : vector<8x32xf32>
    %c0_10 = arith.constant 0 : index
    %c0_11 = arith.constant 0 : index
    %12 = vector.load %arg5[%c0_10, %c0_11] : memref<32x32xbf16, #tpu.memory_space<vmem>>, vector<32x32xbf16>
    %cst_12 = arith.constant dense<0.000000e+00> : vector<8x32xf32>
    %13 = tpu.matmul %2, %12, %cst_12 {dimension_numbers = #tpu.dot_dimension_numbers<[1], [0], [0], [1], [0, 0, 1, 1], [], []>} : vector<8x32xbf16>, vector<32x32xbf16>, vector<8x32xf32> -> vector<8x32xf32>
    %c0_13 = arith.constant 0 : index
    %c0_14 = arith.constant 0 : index
    %14 = vector.load %arg6[%c0_13, %c0_14] : memref<1x32xf32, #tpu.memory_space<vmem>>, vector<1x32xf32>
    %15 = vector.broadcast %14 : vector<1x32xf32> to vector<8x32xf32>
    %16 = arith.addf %13, %15 : vector<8x32xf32>
    %c0_15 = arith.constant 0 : index
    %c0_16 = arith.constant 0 : index
    %17 = vector.load %arg7[%c0_15, %c0_16] : memref<32x32xbf16, #tpu.memory_space<vmem>>, vector<32x32xbf16>
    %cst_17 = arith.constant dense<0.000000e+00> : vector<8x32xf32>
    %18 = tpu.matmul %2, %17, %cst_17 {dimension_numbers = #tpu.dot_dimension_numbers<[1], [0], [0], [1], [0, 0, 1, 1], [], []>} : vector<8x32xbf16>, vector<32x32xbf16>, vector<8x32xf32> -> vector<8x32xf32>
    %c0_18 = arith.constant 0 : index
    %c0_19 = arith.constant 0 : index
    %19 = vector.load %arg8[%c0_18, %c0_19] : memref<1x32xf32, #tpu.memory_space<vmem>>, vector<1x32xf32>
    %20 = vector.broadcast %19 : vector<1x32xf32> to vector<8x32xf32>
    %21 = arith.addf %18, %20 : vector<8x32xf32>
    %cst_20 = arith.constant 0.353553385 : f32
    %22 = vector.broadcast %cst_20 : f32 to vector<8x32xf32>
    %23 = arith.mulf %11, %22 : vector<8x32xf32>
    %24 = tpu.transpose %23, [1, 0] : vector<8x32xf32> -> vector<32x8xf32>
    %25 = vector.shape_cast %24 : vector<32x8xf32> to vector<4x8x8xf32>
    %26 = arith.truncf %25 : vector<4x8x8xf32> to vector<4x8x8xbf16>
    %27 = tpu.transpose %16, [1, 0] : vector<8x32xf32> -> vector<32x8xf32>
    %28 = vector.shape_cast %27 : vector<32x8xf32> to vector<4x8x8xf32>
    %29 = arith.truncf %28 : vector<4x8x8xf32> to vector<4x8x8xbf16>
    %30 = tpu.transpose %21, [1, 0] : vector<8x32xf32> -> vector<32x8xf32>
    %31 = vector.shape_cast %30 : vector<32x8xf32> to vector<4x8x8xf32>
    %32 = arith.truncf %31 : vector<4x8x8xf32> to vector<4x8x8xbf16>
    %cst_21 = arith.constant dense<0.000000e+00> : vector<4x8x8xf32>
    %33 = tpu.matmul %26, %29, %cst_21 {dimension_numbers = #tpu.dot_dimension_numbers<[1], [1], [2], [2], [0, 0, 0, 2, 1, 2], [0], [0]>} : vector<4x8x8xbf16>, vector<4x8x8xbf16>, vector<4x8x8xf32> -> vector<4x8x8xf32>
    %34 = vector.shape_cast %6 : vector<1x8xi1> to vector<1x1x8xi1>
    %cst_22 = arith.constant -1.000000e+09 : f32
    %35 = vector.shape_cast %34 : vector<1x1x8xi1> to vector<1x1x8xi1>
    %36 = vector.broadcast %35 : vector<1x1x8xi1> to vector<4x8x8xi1>
    %37 = vector.broadcast %cst_22 : f32 to vector<4x8x8xf32>
    %38 = arith.select %36, %37, %33 : vector<4x8x8xi1>, vector<4x8x8xf32>
    %cst_23 = arith.constant dense<0xFF800000> : vector<4x8xf32>
    %39 = vector.multi_reduction <maximumf>, %38, %cst_23 [2] : vector<4x8x8xf32> to vector<4x8xf32>
    %40 = vector.shape_cast %39 : vector<4x8xf32> to vector<4x8x1xf32>
    %41 = vector.broadcast %40 : vector<4x8x1xf32> to vector<4x8x8xf32>
    %42 = arith.subf %38, %41 : vector<4x8x8xf32>
    %43 = math.exp %42 : vector<4x8x8xf32>
    %cst_24 = arith.constant dense<0.000000e+00> : vector<4x8xf32>
    %44 = vector.multi_reduction <add>, %43, %cst_24 [2] : vector<4x8x8xf32> to vector<4x8xf32>
    %45 = vector.shape_cast %44 : vector<4x8xf32> to vector<4x8x1xf32>
    %46 = tpu.reciprocal %45 {approx = true} : vector<4x8x1xf32> -> vector<4x8x1xf32>
    %47 = vector.broadcast %46 : vector<4x8x1xf32> to vector<4x8x8xf32>
    %48 = arith.mulf %43, %47 : vector<4x8x8xf32>
    %c0_25 = arith.constant 0 : index
    %c0_26 = arith.constant 0 : index
    %c0_27 = arith.constant 0 : index
    %c0_28 = arith.constant 0 : index
    %49 = vector.load %arg20[%c0_25, %c0_26, %c0_27, %c0_28] : memref<1x4x8x8xf32, #tpu.memory_space<vmem>>, vector<1x4x8x8xf32>
    %50 = vector.shape_cast %49 : vector<1x4x8x8xf32> to vector<4x8x8xf32>
    %51 = vector.shape_cast %48 : vector<4x8x8xf32> to vector<1x4x8x8xf32>
    tpu.vector_store %arg20[%c0_25, %c0_26, %c0_27, %c0_28], %51 {strides = array<i32>} : memref<1x4x8x8xf32, #tpu.memory_space<vmem>>, vector<1x4x8x8xf32>,
    %52 = arith.truncf %48 : vector<4x8x8xf32> to vector<4x8x8xbf16>
    %cst_29 = arith.constant dense<0.000000e+00> : vector<4x8x8xf32>
    %53 = tpu.matmul %32, %52, %cst_29 {dimension_numbers = #tpu.dot_dimension_numbers<[2], [2], [1], [1], [0, 0, 0, 1, 1, 1], [0], [0]>} : vector<4x8x8xbf16>, vector<4x8x8xbf16>, vector<4x8x8xf32> -> vector<4x8x8xf32>
    %54 = vector.shape_cast %53 : vector<4x8x8xf32> to vector<32x8xf32>
    %55 = tpu.transpose %54, [1, 0] : vector<32x8xf32> -> vector<8x32xf32>
    %56 = arith.truncf %55 : vector<8x32xf32> to vector<8x32xbf16>
    %c0_30 = arith.constant 0 : index
    %c0_31 = arith.constant 0 : index
    %57 = vector.load %arg9[%c0_30, %c0_31] : memref<32x32xbf16, #tpu.memory_space<vmem>>, vector<32x32xbf16>
    %cst_32 = arith.constant dense<0.000000e+00> : vector<8x32xf32>
    %58 = tpu.matmul %56, %57, %cst_32 {dimension_numbers = #tpu.dot_dimension_numbers<[1], [0], [0], [1], [0, 0, 1, 1], [], []>} : vector<8x32xbf16>, vector<32x32xbf16>, vector<8x32xf32> -> vector<8x32xf32>
    %c0_33 = arith.constant 0 : index
    %c0_34 = arith.constant 0 : index
    %59 = vector.load %arg10[%c0_33, %c0_34] : memref<1x32xf32, #tpu.memory_space<vmem>>, vector<1x32xf32>
    %60 = vector.broadcast %59 : vector<1x32xf32> to vector<8x32xf32>
    %61 = arith.addf %58, %60 : vector<8x32xf32>
    %62 = arith.addf %61, %1 : vector<8x32xf32>
    %cst_35 = arith.constant dense<0.000000e+00> : vector<8xf32>
    %63 = vector.multi_reduction <add>, %62, %cst_35 [1] : vector<8x32xf32> to vector<8xf32>
    %64 = vector.shape_cast %63 : vector<8xf32> to vector<8x1xf32>
    %cst_36 = arith.constant 3.200000e+01 : f32
    %65 = vector.broadcast %cst_36 : f32 to vector<8x1xf32>
    %66 = arith.divf %64, %65 : vector<8x1xf32>
    %67 = vector.broadcast %66 : vector<8x1xf32> to vector<8x32xf32>
    %68 = arith.subf %62, %67 : vector<8x32xf32>
    %69 = arith.mulf %68, %68 : vector<8x32xf32>
    %cst_37 = arith.constant dense<0.000000e+00> : vector<8xf32>
    %70 = vector.multi_reduction <add>, %69, %cst_37 [1] : vector<8x32xf32> to vector<8xf32>
    %71 = vector.shape_cast %70 : vector<8xf32> to vector<8x1xf32>
    %cst_38 = arith.constant 3.200000e+01 : f32
    %72 = vector.broadcast %cst_38 : f32 to vector<8x1xf32>
    %73 = arith.divf %71, %72 : vector<8x1xf32>
    %74 = vector.broadcast %66 : vector<8x1xf32> to vector<8x32xf32>
    %75 = arith.subf %62, %74 : vector<8x32xf32>
    %cst_39 = arith.constant 9.99999974E-6 : f32
    %76 = vector.broadcast %cst_39 : f32 to vector<8x1xf32>
    %77 = arith.addf %73, %76 : vector<8x1xf32>
    %78 = math.rsqrt %77 : vector<8x1xf32>
    %79 = vector.broadcast %78 : vector<8x1xf32> to vector<8x32xf32>
    %80 = arith.mulf %75, %79 : vector<8x32xf32>
    %c0_40 = arith.constant 0 : index
    %c0_41 = arith.constant 0 : index
    %81 = vector.load %arg11[%c0_40, %c0_41] : memref<1x32xf32, #tpu.memory_space<vmem>>, vector<1x32xf32>
    %82 = vector.broadcast %81 : vector<1x32xf32> to vector<8x32xf32>
    %83 = arith.mulf %80, %82 : vector<8x32xf32>
    %c0_42 = arith.constant 0 : index
    %c0_43 = arith.constant 0 : index
    %84 = vector.load %arg12[%c0_42, %c0_43] : memref<1x32xf32, #tpu.memory_space<vmem>>, vector<1x32xf32>
    %85 = vector.broadcast %84 : vector<1x32xf32> to vector<8x32xf32>
    %86 = arith.addf %83, %85 : vector<8x32xf32>
    %87 = arith.truncf %86 : vector<8x32xf32> to vector<8x32xbf16>
    %c0_44 = arith.constant 0 : index
    %c0_45 = arith.constant 0 : index
    %88 = vector.load %arg13[%c0_44, %c0_45] : memref<32x64xbf16, #tpu.memory_space<vmem>>, vector<32x64xbf16>
    %cst_46 = arith.constant dense<0.000000e+00> : vector<8x64xf32>
    %89 = tpu.matmul %87, %88, %cst_46 {dimension_numbers = #tpu.dot_dimension_numbers<[1], [0], [0], [1], [0, 0, 1, 1], [], []>} : vector<8x32xbf16>, vector<32x64xbf16>, vector<8x64xf32> -> vector<8x64xf32>
    %c0_47 = arith.constant 0 : index
    %c0_48 = arith.constant 0 : index
    %90 = vector.load %arg14[%c0_47, %c0_48] : memref<1x64xf32, #tpu.memory_space<vmem>>, vector<1x64xf32>
    %91 = vector.broadcast %90 : vector<1x64xf32> to vector<8x64xf32>
    %92 = arith.addf %89, %91 : vector<8x64xf32>
    %cst_49 = arith.constant 0.000000e+00 : f32
    %93 = vector.broadcast %cst_49 : f32 to vector<8x64xf32>
    %94 = arith.maximumf %92, %93 : vector<8x64xf32>
    %95 = arith.truncf %94 : vector<8x64xf32> to vector<8x64xbf16>
    %c0_50 = arith.constant 0 : index
    %c0_51 = arith.constant 0 : index
    %96 = vector.load %arg15[%c0_50, %c0_51] : memref<64x32xbf16, #tpu.memory_space<vmem>>, vector<64x32xbf16>
    %cst_52 = arith.constant dense<0.000000e+00> : vector<8x32xf32>
    %97 = tpu.matmul %95, %96, %cst_52 {dimension_numbers = #tpu.dot_dimension_numbers<[1], [0], [0], [1], [0, 0, 1, 1], [], []>} : vector<8x64xbf16>, vector<64x32xbf16>, vector<8x32xf32> -> vector<8x32xf32>
    %c0_53 = arith.constant 0 : index
    %c0_54 = arith.constant 0 : index
    %98 = vector.load %arg16[%c0_53, %c0_54] : memref<1x32xf32, #tpu.memory_space<vmem>>, vector<1x32xf32>
    %99 = vector.broadcast %98 : vector<1x32xf32> to vector<8x32xf32>
    %100 = arith.addf %97, %99 : vector<8x32xf32>
    %101 = arith.addf %100, %86 : vector<8x32xf32>
    %cst_55 = arith.constant dense<0.000000e+00> : vector<8xf32>
    %102 = vector.multi_reduction <add>, %101, %cst_55 [1] : vector<8x32xf32> to vector<8xf32>
    %103 = vector.shape_cast %102 : vector<8xf32> to vector<8x1xf32>
    %cst_56 = arith.constant 3.200000e+01 : f32
    %104 = vector.broadcast %cst_56 : f32 to vector<8x1xf32>
    %105 = arith.divf %103, %104 : vector<8x1xf32>
    %106 = vector.broadcast %105 : vector<8x1xf32> to vector<8x32xf32>
    %107 = arith.subf %101, %106 : vector<8x32xf32>
    %108 = arith.mulf %107, %107 : vector<8x32xf32>
    %cst_57 = arith.constant dense<0.000000e+00> : vector<8xf32>
    %109 = vector.multi_reduction <add>, %108, %cst_57 [1] : vector<8x32xf32> to vector<8xf32>
    %110 = vector.shape_cast %109 : vector<8xf32> to vector<8x1xf32>
    %cst_58 = arith.constant 3.200000e+01 : f32
    %111 = vector.broadcast %cst_58 : f32 to vector<8x1xf32>
    %112 = arith.divf %110, %111 : vector<8x1xf32>
    %113 = vector.broadcast %105 : vector<8x1xf32> to vector<8x32xf32>
    %114 = arith.subf %101, %113 : vector<8x32xf32>
    %cst_59 = arith.constant 9.99999974E-6 : f32
    %115 = vector.broadcast %cst_59 : f32 to vector<8x1xf32>
    %116 = arith.addf %112, %115 : vector<8x1xf32>
    %117 = math.rsqrt %116 : vector<8x1xf32>
    %118 = vector.broadcast %117 : vector<8x1xf32> to vector<8x32xf32>
    %119 = arith.mulf %114, %118 : vector<8x32xf32>
    %c0_60 = arith.constant 0 : index
    %c0_61 = arith.constant 0 : index
    %120 = vector.load %arg17[%c0_60, %c0_61] : memref<1x32xf32, #tpu.memory_space<vmem>>, vector<1x32xf32>
    %121 = vector.broadcast %120 : vector<1x32xf32> to vector<8x32xf32>
    %122 = arith.mulf %119, %121 : vector<8x32xf32>
    %c0_62 = arith.constant 0 : index
    %c0_63 = arith.constant 0 : index
    %123 = vector.load %arg18[%c0_62, %c0_63] : memref<1x32xf32, #tpu.memory_space<vmem>>, vector<1x32xf32>
    %124 = vector.broadcast %123 : vector<1x32xf32> to vector<8x32xf32>
    %125 = arith.addf %122, %124 : vector<8x32xf32>
    %c0_64 = arith.constant 0 : index
    %c0_65 = arith.constant 0 : index
    %c0_66 = arith.constant 0 : index
    %126 = vector.load %arg19[%c0_64, %c0_65, %c0_66] : memref<1x8x32xf32, #tpu.memory_space<vmem>>, vector<1x8x32xf32>
    %127 = vector.shape_cast %126 : vector<1x8x32xf32> to vector<8x32xf32>
    %128 = vector.shape_cast %125 : vector<8x32xf32> to vector<1x8x32xf32>
    tpu.vector_store %arg19[%c0_64, %c0_65, %c0_66], %128 {strides = array<i32>} : memref<1x8x32xf32, #tpu.memory_space<vmem>>, vector<1x8x32xf32>,
    return
  }
  func.func @transform_0(%arg0: i32) -> (i32, i32, i32) {
    %c0_i32 = arith.constant 0 : i32
    %c0_i32_0 = arith.constant 0 : i32
    %c0_i32_1 = arith.constant 0 : i32
    return %arg0, %c0_i32, %c0_i32_0 : i32, i32, i32
  }
  func.func @transform_1(%arg0: i32) -> (i32, i32, i32) {
    %c0_i32 = arith.constant 0 : i32
    %c0_i32_0 = arith.constant 0 : i32
    %c0_i32_1 = arith.constant 0 : i32
    return %arg0, %c0_i32, %c0_i32_0 : i32, i32, i32
  }
  func.func @transform_2(%arg0: i32) -> (i32, i32) {
    %c0_i32 = arith.constant 0 : i32
    %c0_i32_0 = arith.constant 0 : i32
    %c0_i32_1 = arith.constant 0 : i32
    return %c0_i32, %c0_i32_0 : i32, i32
  }
  func.func @transform_3(%arg0: i32) -> (i32, i32) {
    %c0_i32 = arith.constant 0 : i32
    %c0_i32_0 = arith.constant 0 : i32
    %c0_i32_1 = arith.constant 0 : i32
    return %c0_i32, %c0_i32_0 : i32, i32
  }
  func.func @transform_4(%arg0: i32) -> (i32, i32) {
    %c0_i32 = arith.constant 0 : i32
    %c0_i32_0 = arith.constant 0 : i32
    %c0_i32_1 = arith.constant 0 : i32
    return %c0_i32, %c0_i32_0 : i32, i32
  }
  func.func @transform_5(%arg0: i32) -> (i32, i32) {
    %c0_i32 = arith.constant 0 : i32
    %c0_i32_0 = arith.constant 0 : i32
    %c0_i32_1 = arith.constant 0 : i32
    return %c0_i32, %c0_i32_0 : i32, i32
  }
  func.func @transform_6(%arg0: i32) -> (i32, i32) {
    %c0_i32 = arith.constant 0 : i32
    %c0_i32_0 = arith.constant 0 : i32
    %c0_i32_1 = arith.constant 0 : i32
    return %c0_i32, %c0_i32_0 : i32, i32
  }
  func.func @transform_7(%arg0: i32) -> (i32, i32) {
    %c0_i32 = arith.constant 0 : i32
    %c0_i32_0 = arith.constant 0 : i32
    %c0_i32_1 = arith.constant 0 : i32
    return %c0_i32, %c0_i32_0 : i32, i32
  }
  func.func @transform_8(%arg0: i32) -> (i32, i32) {
    %c0_i32 = arith.constant 0 : i32
    %c0_i32_0 = arith.constant 0 : i32
    %c0_i32_1 = arith.constant 0 : i32
    return %c0_i32, %c0_i32_0 : i32, i32
  }
  func.func @transform_9(%arg0: i32) -> (i32, i32) {
    %c0_i32 = arith.constant 0 : i32
    %c0_i32_0 = arith.constant 0 : i32
    %c0_i32_1 = arith.constant 0 : i32
    return %c0_i32, %c0_i32_0 : i32, i32
  }
  func.func @transform_10(%arg0: i32) -> (i32, i32) {
    %c0_i32 = arith.constant 0 : i32
    %c0_i32_0 = arith.constant 0 : i32
    %c0_i32_1 = arith.constant 0 : i32
    return %c0_i32, %c0_i32_0 : i32, i32
  }
  func.func @transform_11(%arg0: i32) -> (i32, i32) {
    %c0_i32 = arith.constant 0 : i32
    %c0_i32_0 = arith.constant 0 : i32
    %c0_i32_1 = arith.constant 0 : i32
    return %c0_i32, %c0_i32_0 : i32, i32
  }
  func.func @transform_12(%arg0: i32) -> (i32, i32) {
    %c0_i32 = arith.constant 0 : i32
    %c0_i32_0 = arith.constant 0 : i32
    %c0_i32_1 = arith.constant 0 : i32
    return %c0_i32, %c0_i32_0 : i32, i32
  }
  func.func @transform_13(%arg0: i32) -> (i32, i32) {
    %c0_i32 = arith.constant 0 : i32
    %c0_i32_0 = arith.constant 0 : i32
    %c0_i32_1 = arith.constant 0 : i32
    return %c0_i32, %c0_i32_0 : i32, i32
  }
  func.func @transform_14(%arg0: i32) -> (i32, i32) {
    %c0_i32 = arith.constant 0 : i32
    %c0_i32_0 = arith.constant 0 : i32
    %c0_i32_1 = arith.constant 0 : i32
    return %c0_i32, %c0_i32_0 : i32, i32
  }
  func.func @transform_15(%arg0: i32) -> (i32, i32) {
    %c0_i32 = arith.constant 0 : i32
    %c0_i32_0 = arith.constant 0 : i32
    %c0_i32_1 = arith.constant 0 : i32
    return %c0_i32, %c0_i32_0 : i32, i32
  }
  func.func @transform_16(%arg0: i32) -> (i32, i32) {
    %c0_i32 = arith.constant 0 : i32
    %c0_i32_0 = arith.constant 0 : i32
    %c0_i32_1 = arith.constant 0 : i32
    return %c0_i32, %c0_i32_0 : i32, i32
  }
  func.func @transform_17(%arg0: i32) -> (i32, i32) {
    %c0_i32 = arith.constant 0 : i32
    %c0_i32_0 = arith.constant 0 : i32
    %c0_i32_1 = arith.constant 0 : i32
    return %c0_i32, %c0_i32_0 : i32, i32
  }
  func.func @transform_18(%arg0: i32) -> (i32, i32, i32) {
    %c0_i32 = arith.constant 0 : i32
    %c0_i32_0 = arith.constant 0 : i32
    %c0_i32_1 = arith.constant 0 : i32
    return %arg0, %c0_i32, %c0_i32_0 : i32, i32, i32
  }
  func.func @transform_19(%arg0: i32) -> (i32, i32, i32, i32) {
    %c0_i32 = arith.constant 0 : i32
    %c0_i32_0 = arith.constant 0 : i32
    %c0_i32_1 = arith.constant 0 : i32
    %c0_i32_2 = arith.constant 0 : i32
    return %arg0, %c0_i32, %c0_i32_0, %c0_i32_1 : i32, i32, i32, i32
  }
}

</mosaic_0001>

<llo_original>
// kernel: tpu_custom_call.1
$region0: #{tpu_custom_call.1}
  #allocation0 [shape = 'u32[]', space=smem, size = 0x4, offset = 0x4, fixed_abs, tag = 'smem constant byte address 0x4 - core index']
  #allocation1 [shape = 'u32[144,128]{1,0:T(1,128)}', space=vmem, size = 0x12000, scoped, tag = 'internal scratch']
  %s0 = inlined_call_operand.vmem [shape: f32[2,8,32], index: 0, kind: input, shape index: {}]
  %s1 = inlined_call_operand.hbm [shape: f32[2,1,8], index: 1, kind: input, shape index: {}]
  %s2 = inlined_call_operand.vmem [shape: bf16[32,32], index: 2, kind: input, shape index: {}]
  %s3 = inlined_call_operand.vmem [shape: f32[1,32], index: 3, kind: input, shape index: {}]
  %s4 = inlined_call_operand.vmem [shape: bf16[32,32], index: 4, kind: input, shape index: {}]
  %s5 = inlined_call_operand.vmem [shape: f32[1,32], index: 5, kind: input, shape index: {}]
  %s6 = inlined_call_operand.hbm [shape: bf16[32,32], index: 6, kind: input, shape index: {}]
  %s7 = inlined_call_operand.vmem [shape: f32[1,32], index: 7, kind: input, shape index: {}]
  %s8 = inlined_call_operand.hbm [shape: bf16[32,32], index: 8, kind: input, shape index: {}]
  %s9 = inlined_call_operand.vmem [shape: f32[1,32], index: 9, kind: input, shape index: {}]
  %s10 = inlined_call_operand.vmem [shape: f32[1,32], index: 10, kind: input, shape index: {}]
  %s11 = inlined_call_operand.vmem [shape: f32[1,32], index: 11, kind: input, shape index: {}]
  %s12 = inlined_call_operand.hbm [shape: bf16[32,64], index: 12, kind: input, shape index: {}]
  %s13 = inlined_call_operand.vmem [shape: f32[1,64], index: 13, kind: input, shape index: {}]
  %s14 = inlined_call_operand.vmem [shape: bf16[64,32], index: 14, kind: input, shape index: {}]
  %s15 = inlined_call_operand.vmem [shape: f32[1,32], index: 15, kind: input, shape index: {}]
  %s16 = inlined_call_operand.vmem [shape: f32[1,32], index: 16, kind: input, shape index: {}]
  %s17 = inlined_call_operand.vmem [shape: f32[1,32], index: 17, kind: input, shape index: {}]
  %s18 = inlined_call_operand.hbm [shape: f32[2,8,32], index: 18, kind: output, shape index: {0}]
  %s19 = inlined_call_operand.hbm [shape: f32[2,4,8,8], index: 19, kind: output, shape index: {1}]
  %20 = xla_tuple %s18, %s19
  %s21 = sld [smem:[#allocation0]]
  $region129: #{tpu_custom_call.1} parent=0
    _
  %s23 = ssub.s32 1, %s21
  %s24 = scalar_select 0, %s23, %s21
  $region1: #{tpu_custom_call.1} parent=0
    #allocation2 [shape = 'u8[1024]{0}', space=vmem, size = 0x400, scoped, tag = 'input window, operand 1']
    #allocation3 [shape = 's32[2]{0}', space=sflag, size = 0x8, scoped, tag = 'scoped memory for tpu_custom_call.1']
    #allocation4 [shape = 's32[2]{0}', space=sflag, size = 0x8, scoped, tag = 'scoped memory for tpu_custom_call.1']
    #allocation5 [shape = 'u8[8192]{0}', space=vmem, size = 0x2000, scoped, tag = 'input window, operand 6, single buffered']
    #allocation6 [shape = 's32[1]{0}', space=sflag, size = 0x4, scoped, tag = 'scoped memory for tpu_custom_call.1']
    #allocation7 [shape = 'u8[8192]{0}', space=vmem, size = 0x2000, scoped, tag = 'input window, operand 8, single buffered']
    #allocation8 [shape = 'u8[8192]{0}', space=vmem, size = 0x2000, scoped, tag = 'input window, operand 12, single buffered']
    #allocation9 [shape = 's32[1]{0}', space=sflag, size = 0x4, scoped, tag = 'scoped memory for tpu_custom_call.1']
    #allocation10 [shape = 'u8[8192]{0}', space=vmem, size = 0x2000, scoped, tag = 'output window, operand 0']
    #allocation11 [shape = 'u8[32768]{0}', space=vmem, size = 0x8000, scoped, tag = 'output window, operand 1']
    #allocation12 [shape = 's32[2]{0}', space=sflag, size = 0x8, scoped, tag = 'scoped memory for tpu_custom_call.1']
    %25 = vsyncpa [#allocation3], 0
    %s26 = scalar_lea.sflag [#allocation3], 1
    %27 = vsyncpa %s26, 0
    %28 = vsyncpa [#allocation6], 0
    %29 = vsyncpa [#allocation9], 0
    %30 = vsyncpa [#allocation4], 0
    %s31 = scalar_lea.sflag [#allocation4], 1
    %32 = vsyncpa %s31, 0
    %33 = vsyncpa [#allocation12], 0
    %s34 = scalar_lea.sflag [#allocation12], 1
    %35 = vsyncpa %s34, 0
    loop: start=0, step=1, limit=4
    $region2: #{tpu_custom_call.1} parent=1 // loop_pre_header
      _
    $region3: #{tpu_custom_call.1} parent=1 // loop_header
      %s37 = sphi 0, %s41
      %p38 = scmp.ge.s32.totalorder %s37, 4
      %s47 = sphi 0, %s49
      %s50 = sphi 0, %s47
      %s51 = sphi 0, %s50
      %s67 = sphi 0, %s51
      %s73 = sphi 0, %s75
      %s76 = sphi 0, %s73
      %s77 = sphi 0, %s76
      %s93 = sphi 0, %s77
      %s97 = sphi 0, %s97
      %s99 = sphi 0, %s97
      %s100 = sphi 0, %s99
      %s114 = sphi 0, %s100
      %s118 = sphi 0, %s118
      %s120 = sphi 0, %s118
      %s121 = sphi 0, %s120
      %s135 = sphi 0, %s121
      %s139 = sphi 0, %s139
      %s141 = sphi 0, %s139
      %s142 = sphi 0, %s141
      %s156 = sphi 0, %s142
      %s160 = sphi 0, %s160
      %s162 = sphi 0, %s160
      %s163 = sphi 0, %s162
      %s177 = sphi 0, %s163
      %s181 = sphi 0, %s181
      %s183 = sphi 0, %s181
      %s184 = sphi 0, %s183
      %s198 = sphi 0, %s184
      %s202 = sphi 0, %s202
      %s204 = sphi 0, %s202
      %s205 = sphi 0, %s204
      %s219 = sphi 0, %s205
      %s223 = sphi 0, %s223
      %s225 = sphi 0, %s223
      %s226 = sphi 0, %s225
      %s240 = sphi 0, %s226
      %s244 = sphi 0, %s244
      %s246 = sphi 0, %s244
      %s247 = sphi 0, %s246
      %s261 = sphi 0, %s247
      %s265 = sphi 0, %s265
      %s267 = sphi 0, %s265
      %s268 = sphi 0, %s267
      %s282 = sphi 0, %s268
      %s286 = sphi 0, %s286
      %s288 = sphi 0, %s286
      %s289 = sphi 0, %s288
      %s303 = sphi 0, %s289
      %s307 = sphi 0, %s307
      %s309 = sphi 0, %s307
      %s310 = sphi 0, %s309
      %s324 = sphi 0, %s310
      %s328 = sphi 0, %s328
      %s330 = sphi 0, %s328
      %s331 = sphi 0, %s330
      %s345 = sphi 0, %s331
      %s349 = sphi 0, %s349
      %s351 = sphi 0, %s349
      %s352 = sphi 0, %s351
      %s366 = sphi 0, %s352
      %s370 = sphi 0, %s370
      %s372 = sphi 0, %s370
      %s373 = sphi 0, %s372
      %s387 = sphi 0, %s373
      %s391 = sphi 0, %s391
      %s393 = sphi 0, %s391
      %s394 = sphi 0, %s393
      %s408 = sphi 0, %s394
      %s412 = sphi 0, %s412
      %s414 = sphi 0, %s412
      %s415 = sphi 0, %s414
      %s429 = sphi 0, %s415
      %s435 = sphi 0, %s437
      %s438 = sphi 0, %s435
      %s439 = sphi 0, %s438
      %s455 = sphi 0, %s439
      %s461 = sphi 0, %s463
      %s464 = sphi 0, %s461
      %s465 = sphi 0, %s464
      %s481 = sphi 0, %s465
    $region4: #{tpu_custom_call.1} parent=1 // loop_header_branch
      %40 = sbr.rel (%p38) target = $region8
    $region5: #{tpu_custom_call.1} parent=1 // loop_body
      %s42 = ssub.s32 %s37, 1
      %s43 = ssub.s32 %s37, 2
      %s44 = sadd.s32 %s37, 1
      %s45 = ssub.s32 %s37, %s44
      %p46 = scmp.eq.s32.totalorder %s45, 0
      %s48 = sadd.s32 %s47, 1
      %s49 = scalar_select %p46, %s47, %s48
      %p52 = pneg %p46
      %p53 = scmp.eq.s32.totalorder %s37, 1
      %p54 = por %p52, %p53
      %p55 = scmp.ne.s32.totalorder %s47, %s50
      %p56 = scmp.eq.s32.totalorder %s37, 0
      %p57 = por %p55, %p56
      %p58 = scmp.ne.s32.totalorder %s47, %s50
      %p59 = scmp.eq.s32.totalorder %s42, 1
      %p60 = por %p58, %p59
      %p61 = scmp.ne.s32.totalorder %s50, %s51
      %p62 = scmp.eq.s32.totalorder %s42, 0
      %p63 = por %p61, %p62
      %p64 = scmp.ne.s32.totalorder %s50, %s51
      %p65 = scmp.eq.s32.totalorder %s43, 1
      %p66 = por %p64, %p65
      %p68 = scmp.ne.s32.totalorder %s51, %s67
      %p69 = scmp.eq.s32.totalorder %s43, 0
      %p70 = por %p68, %p69
      %s71 = ssub.s32 %s37, %s44
      %p72 = scmp.eq.s32.totalorder %s71, 0
      %s74 = sadd.s32 %s73, 1
      %s75 = scalar_select %p72, %s73, %s74
      %p78 = pneg %p72
      %p79 = scmp.eq.s32.totalorder %s37, 1
      %p80 = por %p78, %p79
      %p81 = scmp.ne.s32.totalorder %s73, %s76
      %p82 = scmp.eq.s32.totalorder %s37, 0
      %p83 = por %p81, %p82
      %p84 = scmp.ne.s32.totalorder %s73, %s76
      %p85 = scmp.eq.s32.totalorder %s42, 1
      %p86 = por %p84, %p85
      %p87 = scmp.ne.s32.totalorder %s76, %s77
      %p88 = scmp.eq.s32.totalorder %s42, 0
      %p89 = por %p87, %p88
      %p90 = scmp.ne.s32.totalorder %s76, %s77
      %p91 = scmp.eq.s32.totalorder %s43, 1
      %p92 = por %p90, %p91
      %p94 = scmp.ne.s32.totalorder %s77, %s93
      %p95 = scmp.eq.s32.totalorder %s43, 0
      %p96 = por %p94, %p95
      %s98 = sadd.s32 %s97, 1
      %p101 = scmp.eq.s32.totalorder %s37, 1
      %p102 = scmp.ne.s32.totalorder %s97, %s99
      %p103 = scmp.eq.s32.totalorder %s37, 0
      %p104 = por %p102, %p103
      %p105 = scmp.ne.s32.totalorder %s97, %s99
      %p106 = scmp.eq.s32.totalorder %s42, 1
      %p107 = por %p105, %p106
      %p108 = scmp.ne.s32.totalorder %s99, %s100
      %p109 = scmp.eq.s32.totalorder %s42, 0
      %p110 = por %p108, %p109
      %p111 = scmp.ne.s32.totalorder %s99, %s100
      %p112 = scmp.eq.s32.totalorder %s43, 1
      %p113 = por %p111, %p112
      %p115 = scmp.ne.s32.totalorder %s100, %s114
      %p116 = scmp.eq.s32.totalorder %s43, 0
      %p117 = por %p115, %p116
      %s119 = sadd.s32 %s118, 1
      %p122 = scmp.eq.s32.totalorder %s37, 1
      %p123 = scmp.ne.s32.totalorder %s118, %s120
      %p124 = scmp.eq.s32.totalorder %s37, 0
      %p125 = por %p123, %p124
      %p126 = scmp.ne.s32.totalorder %s118, %s120
      %p127 = scmp.eq.s32.totalorder %s42, 1
      %p128 = por %p126, %p127
      %p129 = scmp.ne.s32.totalorder %s120, %s121
      %p130 = scmp.eq.s32.totalorder %s42, 0
      %p131 = por %p129, %p130
      %p132 = scmp.ne.s32.totalorder %s120, %s121
      %p133 = scmp.eq.s32.totalorder %s43, 1
      %p134 = por %p132, %p133
      %p136 = scmp.ne.s32.totalorder %s121, %s135
      %p137 = scmp.eq.s32.totalorder %s43, 0
      %p138 = por %p136, %p137
      %s140 = sadd.s32 %s139, 1
      %p143 = scmp.eq.s32.totalorder %s37, 1
      %p144 = scmp.ne.s32.totalorder %s139, %s141
      %p145 = scmp.eq.s32.totalorder %s37, 0
      %p146 = por %p144, %p145
      %p147 = scmp.ne.s32.totalorder %s139, %s141
      %p148 = scmp.eq.s32.totalorder %s42, 1
      %p149 = por %p147, %p148
      %p150 = scmp.ne.s32.totalorder %s141, %s142
      %p151 = scmp.eq.s32.totalorder %s42, 0
      %p152 = por %p150, %p151
      %p153 = scmp.ne.s32.totalorder %s141, %s142
      %p154 = scmp.eq.s32.totalorder %s43, 1
      %p155 = por %p153, %p154
      %p157 = scmp.ne.s32.totalorder %s142, %s156
      %p158 = scmp.eq.s32.totalorder %s43, 0
      %p159 = por %p157, %p158
      %s161 = sadd.s32 %s160, 1
      %p164 = scmp.eq.s32.totalorder %s37, 1
      %p165 = scmp.ne.s32.totalorder %s160, %s162
      %p166 = scmp.eq.s32.totalorder %s37, 0
      %p167 = por %p165, %p166
      %p168 = scmp.ne.s32.totalorder %s160, %s162
      %p169 = scmp.eq.s32.totalorder %s42, 1
      %p170 = por %p168, %p169
      %p171 = scmp.ne.s32.totalorder %s162, %s163
      %p172 = scmp.eq.s32.totalorder %s42, 0
      %p173 = por %p171, %p172
      %p174 = scmp.ne.s32.totalorder %s162, %s163
      %p175 = scmp.eq.s32.totalorder %s43, 1
      %p176 = por %p174, %p175
      %p178 = scmp.ne.s32.totalorder %s163, %s177
      %p179 = scmp.eq.s32.totalorder %s43, 0
      %p180 = por %p178, %p179
      %s182 = sadd.s32 %s181, 1
      %p185 = scmp.eq.s32.totalorder %s37, 1
      %p186 = scmp.ne.s32.totalorder %s181, %s183
      %p187 = scmp.eq.s32.totalorder %s37, 0
      %p188 = por %p186, %p187
      %p189 = scmp.ne.s32.totalorder %s181, %s183
      %p190 = scmp.eq.s32.totalorder %s42, 1
      %p191 = por %p189, %p190
      %p192 = scmp.ne.s32.totalorder %s183, %s184
      %p193 = scmp.eq.s32.totalorder %s42, 0
      %p194 = por %p192, %p193
      %p195 = scmp.ne.s32.totalorder %s183, %s184
      %p196 = scmp.eq.s32.totalorder %s43, 1
      %p197 = por %p195, %p196
      %p199 = scmp.ne.s32.totalorder %s184, %s198
      %p200 = scmp.eq.s32.totalorder %s43, 0
      %p201 = por %p199, %p200
      %s203 = sadd.s32 %s202, 1
      %p206 = scmp.eq.s32.totalorder %s37, 1
      %p207 = scmp.ne.s32.totalorder %s202, %s204
      %p208 = scmp.eq.s32.totalorder %s37, 0
      %p209 = por %p207, %p208
      %p210 = scmp.ne.s32.totalorder %s202, %s204
      %p211 = scmp.eq.s32.totalorder %s42, 1
      %p212 = por %p210, %p211
      %p213 = scmp.ne.s32.totalorder %s204, %s205
      %p214 = scmp.eq.s32.totalorder %s42, 0
      %p215 = por %p213, %p214
      %p216 = scmp.ne.s32.totalorder %s204, %s205
      %p217 = scmp.eq.s32.totalorder %s43, 1
      %p218 = por %p216, %p217
      %p220 = scmp.ne.s32.totalorder %s205, %s219
      %p221 = scmp.eq.s32.totalorder %s43, 0
      %p222 = por %p220, %p221
      %s224 = sadd.s32 %s223, 1
      %p227 = scmp.eq.s32.totalorder %s37, 1
      %p228 = scmp.ne.s32.totalorder %s223, %s225
      %p229 = scmp.eq.s32.totalorder %s37, 0
      %p230 = por %p228, %p229
      %p231 = scmp.ne.s32.totalorder %s223, %s225
      %p232 = scmp.eq.s32.totalorder %s42, 1
      %p233 = por %p231, %p232
      %p234 = scmp.ne.s32.totalorder %s225, %s226
      %p235 = scmp.eq.s32.totalorder %s42, 0
      %p236 = por %p234, %p235
      %p237 = scmp.ne.s32.totalorder %s225, %s226
      %p238 = scmp.eq.s32.totalorder %s43, 1
      %p239 = por %p237, %p238
      %p241 = scmp.ne.s32.totalorder %s226, %s240
      %p242 = scmp.eq.s32.totalorder %s43, 0
      %p243 = por %p241, %p242
      %s245 = sadd.s32 %s244, 1
      %p248 = scmp.eq.s32.totalorder %s37, 1
      %p249 = scmp.ne.s32.totalorder %s244, %s246
      %p250 = scmp.eq.s32.totalorder %s37, 0
      %p251 = por %p249, %p250
      %p252 = scmp.ne.s32.totalorder %s244, %s246
      %p253 = scmp.eq.s32.totalorder %s42, 1
      %p254 = por %p252, %p253
      %p255 = scmp.ne.s32.totalorder %s246, %s247
      %p256 = scmp.eq.s32.totalorder %s42, 0
      %p257 = por %p255, %p256
      %p258 = scmp.ne.s32.totalorder %s246, %s247
      %p259 = scmp.eq.s32.totalorder %s43, 1
      %p260 = por %p258, %p259
      %p262 = scmp.ne.s32.totalorder %s247, %s261
      %p263 = scmp.eq.s32.totalorder %s43, 0
      %p264 = por %p262, %p263
      %s266 = sadd.s32 %s265, 1
      %p269 = scmp.eq.s32.totalorder %s37, 1
      %p270 = scmp.ne.s32.totalorder %s265, %s267
      %p271 = scmp.eq.s32.totalorder %s37, 0
      %p272 = por %p270, %p271
      %p273 = scmp.ne.s32.totalorder %s265, %s267
      %p274 = scmp.eq.s32.totalorder %s42, 1
      %p275 = por %p273, %p274
      %p276 = scmp.ne.s32.totalorder %s267, %s268
      %p277 = scmp.eq.s32.totalorder %s42, 0
      %p278 = por %p276, %p277
      %p279 = scmp.ne.s32.totalorder %s267, %s268
      %p280 = scmp.eq.s32.totalorder %s43, 1
      %p281 = por %p279, %p280
      %p283 = scmp.ne.s32.totalorder %s268, %s282
      %p284 = scmp.eq.s32.totalorder %s43, 0
      %p285 = por %p283, %p284
      %s287 = sadd.s32 %s286, 1
      %p290 = scmp.eq.s32.totalorder %s37, 1
      %p291 = scmp.ne.s32.totalorder %s286, %s288
      %p292 = scmp.eq.s32.totalorder %s37, 0
      %p293 = por %p291, %p292
      %p294 = scmp.ne.s32.totalorder %s286, %s288
      %p295 = scmp.eq.s32.totalorder %s42, 1
      %p296 = por %p294, %p295
      %p297 = scmp.ne.s32.totalorder %s288, %s289
      %p298 = scmp.eq.s32.totalorder %s42, 0
      %p299 = por %p297, %p298
      %p300 = scmp.ne.s32.totalorder %s288, %s289
      %p301 = scmp.eq.s32.totalorder %s43, 1
      %p302 = por %p300, %p301
      %p304 = scmp.ne.s32.totalorder %s289, %s303
      %p305 = scmp.eq.s32.totalorder %s43, 0
      %p306 = por %p304, %p305
      %s308 = sadd.s32 %s307, 1
      %p311 = scmp.eq.s32.totalorder %s37, 1
      %p312 = scmp.ne.s32.totalorder %s307, %s309
      %p313 = scmp.eq.s32.totalorder %s37, 0
      %p314 = por %p312, %p313
      %p315 = scmp.ne.s32.totalorder %s307, %s309
      %p316 = scmp.eq.s32.totalorder %s42, 1
      %p317 = por %p315, %p316
      %p318 = scmp.ne.s32.totalorder %s309, %s310
      %p319 = scmp.eq.s32.totalorder %s42, 0
      %p320 = por %p318, %p319
      %p321 = scmp.ne.s32.totalorder %s309, %s310
      %p322 = scmp.eq.s32.totalorder %s43, 1
      %p323 = por %p321, %p322
      %p325 = scmp.ne.s32.totalorder %s310, %s324
      %p326 = scmp.eq.s32.totalorder %s43, 0
      %p327 = por %p325, %p326
      %s329 = sadd.s32 %s328, 1
      %p332 = scmp.eq.s32.totalorder %s37, 1
      %p333 = scmp.ne.s32.totalorder %s328, %s330
      %p334 = scmp.eq.s32.totalorder %s37, 0
      %p335 = por %p333, %p334
      %p336 = scmp.ne.s32.totalorder %s328, %s330
      %p337 = scmp.eq.s32.totalorder %s42, 1
      %p338 = por %p336, %p337
      %p339 = scmp.ne.s32.totalorder %s330, %s331
      %p340 = scmp.eq.s32.totalorder %s42, 0
      %p341 = por %p339, %p340
      %p342 = scmp.ne.s32.totalorder %s330, %s331
      %p343 = scmp.eq.s32.totalorder %s43, 1
      %p344 = por %p342, %p343
      %p346 = scmp.ne.s32.totalorder %s331, %s345
      %p347 = scmp.eq.s32.totalorder %s43, 0
      %p348 = por %p346, %p347
      %s350 = sadd.s32 %s349, 1
      %p353 = scmp.eq.s32.totalorder %s37, 1
      %p354 = scmp.ne.s32.totalorder %s349, %s351
      %p355 = scmp.eq.s32.totalorder %s37, 0
      %p356 = por %p354, %p355
      %p357 = scmp.ne.s32.totalorder %s349, %s351
      %p358 = scmp.eq.s32.totalorder %s42, 1
      %p359 = por %p357, %p358
      %p360 = scmp.ne.s32.totalorder %s351, %s352
      %p361 = scmp.eq.s32.totalorder %s42, 0
      %p362 = por %p360, %p361
      %p363 = scmp.ne.s32.totalorder %s351, %s352
      %p364 = scmp.eq.s32.totalorder %s43, 1
      %p365 = por %p363, %p364
      %p367 = scmp.ne.s32.totalorder %s352, %s366
      %p368 = scmp.eq.s32.totalorder %s43, 0
      %p369 = por %p367, %p368
      %s371 = sadd.s32 %s370, 1
      %p374 = scmp.eq.s32.totalorder %s37, 1
      %p375 = scmp.ne.s32.totalorder %s370, %s372
      %p376 = scmp.eq.s32.totalorder %s37, 0
      %p377 = por %p375, %p376
      %p378 = scmp.ne.s32.totalorder %s370, %s372
      %p379 = scmp.eq.s32.totalorder %s42, 1
      %p380 = por %p378, %p379
      %p381 = scmp.ne.s32.totalorder %s372, %s373
      %p382 = scmp.eq.s32.totalorder %s42, 0
      %p383 = por %p381, %p382
      %p384 = scmp.ne.s32.totalorder %s372, %s373
      %p385 = scmp.eq.s32.totalorder %s43, 1
      %p386 = por %p384, %p385
      %p388 = scmp.ne.s32.totalorder %s373, %s387
      %p389 = scmp.eq.s32.totalorder %s43, 0
      %p390 = por %p388, %p389
      %s392 = sadd.s32 %s391, 1
      %p395 = scmp.eq.s32.totalorder %s37, 1
      %p396 = scmp.ne.s32.totalorder %s391, %s393
      %p397 = scmp.eq.s32.totalorder %s37, 0
      %p398 = por %p396, %p397
      %p399 = scmp.ne.s32.totalorder %s391, %s393
      %p400 = scmp.eq.s32.totalorder %s42, 1
      %p401 = por %p399, %p400
      %p402 = scmp.ne.s32.totalorder %s393, %s394
      %p403 = scmp.eq.s32.totalorder %s42, 0
      %p404 = por %p402, %p403
      %p405 = scmp.ne.s32.totalorder %s393, %s394
      %p406 = scmp.eq.s32.totalorder %s43, 1
      %p407 = por %p405, %p406
      %p409 = scmp.ne.s32.totalorder %s394, %s408
      %p410 = scmp.eq.s32.totalorder %s43, 0
      %p411 = por %p409, %p410
      %s413 = sadd.s32 %s412, 1
      %p416 = scmp.eq.s32.totalorder %s37, 1
      %p417 = scmp.ne.s32.totalorder %s412, %s414
      %p418 = scmp.eq.s32.totalorder %s37, 0
      %p419 = por %p417, %p418
      %p420 = scmp.ne.s32.totalorder %s412, %s414
      %p421 = scmp.eq.s32.totalorder %s42, 1
      %p422 = por %p420, %p421
      %p423 = scmp.ne.s32.totalorder %s414, %s415
      %p424 = scmp.eq.s32.totalorder %s42, 0
      %p425 = por %p423, %p424
      %p426 = scmp.ne.s32.totalorder %s414, %s415
      %p427 = scmp.eq.s32.totalorder %s43, 1
      %p428 = por %p426, %p427
      %p430 = scmp.ne.s32.totalorder %s415, %s429
      %p431 = scmp.eq.s32.totalorder %s43, 0
      %p432 = por %p430, %p431
      %s433 = ssub.s32 %s37, %s44
      %p434 = scmp.eq.s32.totalorder %s433, 0
      %s436 = sadd.s32 %s435, 1
      %s437 = scalar_select %p434, %s435, %s436
      %p440 = pneg %p434
      %p441 = scmp.eq.s32.totalorder %s37, 1
      %p442 = por %p440, %p441
      %p443 = scmp.ne.s32.totalorder %s435, %s438
      %p444 = scmp.eq.s32.totalorder %s37, 0
      %p445 = por %p443, %p444
      %p446 = scmp.ne.s32.totalorder %s435, %s438
      %p447 = scmp.eq.s32.totalorder %s42, 1
      %p448 = por %p446, %p447
      %p449 = scmp.ne.s32.totalorder %s438, %s439
      %p450 = scmp.eq.s32.totalorder %s42, 0
      %p451 = por %p449, %p450
      %p452 = scmp.ne.s32.totalorder %s438, %s439
      %p453 = scmp.eq.s32.totalorder %s43, 1
      %p454 = por %p452, %p453
      %p456 = scmp.ne.s32.totalorder %s439, %s455
      %p457 = scmp.eq.s32.totalorder %s43, 0
      %p458 = por %p456, %p457
      %s459 = ssub.s32 %s37, %s44
      %p460 = scmp.eq.s32.totalorder %s459, 0
      %s462 = sadd.s32 %s461, 1
      %s463 = scalar_select %p460, %s461, %s462
      %p466 = pneg %p460
      %p467 = scmp.eq.s32.totalorder %s37, 1
      %p468 = por %p466, %p467
      %p469 = scmp.ne.s32.totalorder %s461, %s464
      %p470 = scmp.eq.s32.totalorder %s37, 0
      %p471 = por %p469, %p470
      %p472 = scmp.ne.s32.totalorder %s461, %s464
      %p473 = scmp.eq.s32.totalorder %s42, 1
      %p474 = por %p472, %p473
      %p475 = scmp.ne.s32.totalorder %s464, %s465
      %p476 = scmp.eq.s32.totalorder %s42, 0
      %p477 = por %p475, %p476
      %p478 = scmp.ne.s32.totalorder %s464, %s465
      %p479 = scmp.eq.s32.totalorder %s43, 1
      %p480 = por %p478, %p479
      %p482 = scmp.ne.s32.totalorder %s465, %s481
      %p483 = scmp.eq.s32.totalorder %s43, 0
      %p484 = por %p482, %p483
      %p485 = scmp.le.s32.totalorder 1, %s37
      %p486 = scmp.lt.s32.totalorder %s37, 3
      %p487 = pnand %p485, %p486
      %p488 = pneg %p487
      // Predicated region
      $region9: #{tpu_custom_call.1} parent=5 // pred_check
        _
      $region10: #{tpu_custom_call.1} parent=5 // pred_check_branch
        %490 = sbr.rel (%p487) target = $region12
      $region11: #{tpu_custom_call.1} parent=5 // pred_region
        %s491 = ssub.s32 %s37, 1
        // Predicated region
        $region13: #{tpu_custom_call.1} parent=11 // pred_check
          %p492 = pneg %p110
        $region14: #{tpu_custom_call.1} parent=11 // pred_check_branch
          %494 = sbr.rel (%p492) target = $region16
        $region15: #{tpu_custom_call.1} parent=11 // pred_region
          _
        $region16: #{tpu_custom_call.1} parent=11 // pred_fallthru
          _
        // Predicated region
        $region17: #{tpu_custom_call.1} parent=11 // pred_check
          %p495 = pneg %p131
        $region18: #{tpu_custom_call.1} parent=11 // pred_check_branch
          %497 = sbr.rel (%p495) target = $region20
        $region19: #{tpu_custom_call.1} parent=11 // pred_region
          _
        $region20: #{tpu_custom_call.1} parent=11 // pred_fallthru
          _
        // Predicated region
        $region21: #{tpu_custom_call.1} parent=11 // pred_check
          %p498 = pneg %p152
        $region22: #{tpu_custom_call.1} parent=11 // pred_check_branch
          %500 = sbr.rel (%p498) target = $region24
        $region23: #{tpu_custom_call.1} parent=11 // pred_region
          _
        $region24: #{tpu_custom_call.1} parent=11 // pred_fallthru
          _
        // Predicated region
        $region25: #{tpu_custom_call.1} parent=11 // pred_check
          %p501 = pneg %p173
        $region26: #{tpu_custom_call.1} parent=11 // pred_check_branch
          %503 = sbr.rel (%p501) target = $region28
        $region27: #{tpu_custom_call.1} parent=11 // pred_region
          _
        $region28: #{tpu_custom_call.1} parent=11 // pred_fallthru
          _
        // Predicated region
        $region29: #{tpu_custom_call.1} parent=11 // pred_check
          %p504 = pneg %p194
        $region30: #{tpu_custom_call.1} parent=11 // pred_check_branch
          %506 = sbr.rel (%p504) target = $region32
        $region31: #{tpu_custom_call.1} parent=11 // pred_region
          %s508 = ssub.s32 256, 256
          %509 = vsyncadd [#allocation6], %s508
          %s510 = sshll.u32 [#allocation5], 4
          %s511 = int_to_ptr.vmem [resolvable:$true] %s510
          %516 = dma.hbm_to_vmem [thread:$0]  %s6, 256, %s511, [#allocation6], 64, 64, 4
        $region32: #{tpu_custom_call.1} parent=11 // pred_fallthru
          _
        // Predicated region
        $region33: #{tpu_custom_call.1} parent=11 // pred_check
          %p517 = pneg %p215
        $region34: #{tpu_custom_call.1} parent=11 // pred_check_branch
          %519 = sbr.rel (%p517) target = $region36
        $region35: #{tpu_custom_call.1} parent=11 // pred_region
          _
        $region36: #{tpu_custom_call.1} parent=11 // pred_fallthru
          _
        // Predicated region
        $region37: #{tpu_custom_call.1} parent=11 // pred_check
          %p520 = pneg %p236
        $region38: #{tpu_custom_call.1} parent=11 // pred_check_branch
          %522 = sbr.rel (%p520) target = $region40
        $region39: #{tpu_custom_call.1} parent=11 // pred_region
          %s524 = ssub.s32 256, 256
          %525 = vsyncadd [#allocation6], %s524
          %s526 = sshll.u32 [#allocation7], 4
          %s527 = int_to_ptr.vmem [resolvable:$true] %s526
          %532 = dma.hbm_to_vmem [thread:$0]  %s8, 256, %s527, [#allocation6], 64, 64, 4
        $region40: #{tpu_custom_call.1} parent=11 // pred_fallthru
          _
        // Predicated region
        $region41: #{tpu_custom_call.1} parent=11 // pred_check
          %p533 = pneg %p257
        $region42: #{tpu_custom_call.1} parent=11 // pred_check_branch
          %535 = sbr.rel (%p533) target = $region44
        $region43: #{tpu_custom_call.1} parent=11 // pred_region
          _
        $region44: #{tpu_custom_call.1} parent=11 // pred_fallthru
          _
        // Predicated region
        $region45: #{tpu_custom_call.1} parent=11 // pred_check
          %p536 = pneg %p278
        $region46: #{tpu_custom_call.1} parent=11 // pred_check_branch
          %538 = sbr.rel (%p536) target = $region48
        $region47: #{tpu_custom_call.1} parent=11 // pred_region
          _
        $region48: #{tpu_custom_call.1} parent=11 // pred_fallthru
          _
        // Predicated region
        $region49: #{tpu_custom_call.1} parent=11 // pred_check
          %p539 = pneg %p299
        $region50: #{tpu_custom_call.1} parent=11 // pred_check_branch
          %541 = sbr.rel (%p539) target = $region52
        $region51: #{tpu_custom_call.1} parent=11 // pred_region
          _
        $region52: #{tpu_custom_call.1} parent=11 // pred_fallthru
          _
        // Predicated region
        $region53: #{tpu_custom_call.1} parent=11 // pred_check
          %p542 = pneg %p320
        $region54: #{tpu_custom_call.1} parent=11 // pred_check_branch
          %544 = sbr.rel (%p542) target = $region56
        $region55: #{tpu_custom_call.1} parent=11 // pred_region
          %s546 = ssub.s32 256, 256
          %547 = vsyncadd [#allocation9], %s546
          %s548 = sshll.u32 [#allocation8], 4
          %s549 = int_to_ptr.vmem [resolvable:$true] %s548
          %554 = dma.hbm_to_vmem [thread:$0]  %s12, 256, %s549, [#allocation9], 64, 64, 4
        $region56: #{tpu_custom_call.1} parent=11 // pred_fallthru
          _
        // Predicated region
        $region57: #{tpu_custom_call.1} parent=11 // pred_check
          %p555 = pneg %p341
        $region58: #{tpu_custom_call.1} parent=11 // pred_check_branch
          %557 = sbr.rel (%p555) target = $region60
        $region59: #{tpu_custom_call.1} parent=11 // pred_region
          _
        $region60: #{tpu_custom_call.1} parent=11 // pred_fallthru
          _
        // Predicated region
        $region61: #{tpu_custom_call.1} parent=11 // pred_check
          %p558 = pneg %p362
        $region62: #{tpu_custom_call.1} parent=11 // pred_check_branch
          %560 = sbr.rel (%p558) target = $region64
        $region63: #{tpu_custom_call.1} parent=11 // pred_region
          _
        $region64: #{tpu_custom_call.1} parent=11 // pred_fallthru
          _
        // Predicated region
        $region65: #{tpu_custom_call.1} parent=11 // pred_check
          %p561 = pneg %p383
        $region66: #{tpu_custom_call.1} parent=11 // pred_check_branch
          %563 = sbr.rel (%p561) target = $region68
        $region67: #{tpu_custom_call.1} parent=11 // pred_region
          _
        $region68: #{tpu_custom_call.1} parent=11 // pred_fallthru
          _
        // Predicated region
        $region69: #{tpu_custom_call.1} parent=11 // pred_check
          %p564 = pneg %p404
        $region70: #{tpu_custom_call.1} parent=11 // pred_check_branch
          %566 = sbr.rel (%p564) target = $region72
        $region71: #{tpu_custom_call.1} parent=11 // pred_region
          _
        $region72: #{tpu_custom_call.1} parent=11 // pred_fallthru
          _
        // Predicated region
        $region73: #{tpu_custom_call.1} parent=11 // pred_check
          %p567 = pneg %p425
        $region74: #{tpu_custom_call.1} parent=11 // pred_check_branch
          %569 = sbr.rel (%p567) target = $region76
        $region75: #{tpu_custom_call.1} parent=11 // pred_region
          _
        $region76: #{tpu_custom_call.1} parent=11 // pred_fallthru
          _
      $region12: #{tpu_custom_call.1} parent=5 // pred_fallthru
        _
      %p570 = scmp.lt.s32.totalorder %s37, 2
      // Predicated region
      $region77: #{tpu_custom_call.1} parent=5 // pred_check
        %p571 = pneg %p570
      $region78: #{tpu_custom_call.1} parent=5 // pred_check_branch
        %573 = sbr.rel (%p571) target = $region80
      $region79: #{tpu_custom_call.1} parent=5 // pred_region
        // Predicated region
        $region81: #{tpu_custom_call.1} parent=79 // pred_check
          %p574 = pneg %p57
        $region82: #{tpu_custom_call.1} parent=79 // pred_check_branch
          %576 = sbr.rel (%p574) target = $region84
        $region83: #{tpu_custom_call.1} parent=79 // pred_region
          %p577 = scmp.lt.s32.totalorder %s37, 1
          %s578 = scalar_select %p577, %s37, 1
          %s579 = smul.addr %s578, 8
          %s580 = scalar_lea.vmem %s0, %s579
        $region84: #{tpu_custom_call.1} parent=79 // pred_fallthru
          _
        // Predicated region
        $region85: #{tpu_custom_call.1} parent=79 // pred_check
          %p581 = pneg %p83
        $region86: #{tpu_custom_call.1} parent=79 // pred_check_branch
          %583 = sbr.rel (%p581) target = $region88
        $region87: #{tpu_custom_call.1} parent=79 // pred_region
          %s584 = sand.u32 %s73, 1
          %s585 = scalar_lea.sflag [#allocation3], %s584
          %s586 = sand.u32 %s73, 1
          %s587 = scalar_lea.vmem [#allocation2], %s586
          %s589 = ssub.s32 16, 16
          %590 = vsyncadd %s585, %s589
          %s591 = smul.addr %s37, 16
          %s592 = scalar_lea.hbm %s1, %s591
          %s594 = sshll.u32 %s587, 4
          %s595 = int_to_ptr.vmem [resolvable:$true] %s594
          %597 = dma.hbm_to_vmem [thread:$0]  %s592, 16, %s595, %s585
        $region88: #{tpu_custom_call.1} parent=79 // pred_fallthru
          _
      $region80: #{tpu_custom_call.1} parent=5 // pred_fallthru
        _
      %p598 = scmp.le.s32.totalorder 1, %s37
      %p599 = scmp.lt.s32.totalorder %s37, 3
      %p600 = pnand %p598, %p599
      %p601 = pneg %p600
      // Predicated region
      $region89: #{tpu_custom_call.1} parent=5 // pred_check
        _
      $region90: #{tpu_custom_call.1} parent=5 // pred_check_branch
        %603 = sbr.rel (%p600) target = $region92
      $region91: #{tpu_custom_call.1} parent=5 // pred_region
        %s604 = ssub.s32 %s37, 1
        %s605 = sand.u32 %s76, 1
        %s606 = scalar_lea.sflag [#allocation3], %s605
        %s607 = sand.u32 %s76, 1
        %s608 = scalar_lea.vmem [#allocation2], %s607
        // Predicated region
        $region93: #{tpu_custom_call.1} parent=91 // pred_check
          %p609 = pneg %p89
        $region94: #{tpu_custom_call.1} parent=91 // pred_check_branch
          %611 = sbr.rel (%p609) target = $region96
        $region95: #{tpu_custom_call.1} parent=91 // pred_region
          %612 = dma.done %s606, 16
        $region96: #{tpu_custom_call.1} parent=91 // pred_fallthru
          _
        // Predicated region
        $region97: #{tpu_custom_call.1} parent=91 // pred_check
          %p613 = pneg %p194
        $region98: #{tpu_custom_call.1} parent=91 // pred_check_branch
          %615 = sbr.rel (%p613) target = $region100
        $region99: #{tpu_custom_call.1} parent=91 // pred_region
          %616 = dma.done [#allocation6], 256
        $region100: #{tpu_custom_call.1} parent=91 // pred_fallthru
          _
        // Predicated region
        $region101: #{tpu_custom_call.1} parent=91 // pred_check
          %p617 = pneg %p236
        $region102: #{tpu_custom_call.1} parent=91 // pred_check_branch
          %619 = sbr.rel (%p617) target = $region104
        $region103: #{tpu_custom_call.1} parent=91 // pred_region
          %620 = dma.done [#allocation6], 256
        $region104: #{tpu_custom_call.1} parent=91 // pred_fallthru
          _
        // Predicated region
        $region105: #{tpu_custom_call.1} parent=91 // pred_check
          %p621 = pneg %p320
        $region106: #{tpu_custom_call.1} parent=91 // pred_check_branch
          %623 = sbr.rel (%p621) target = $region108
        $region107: #{tpu_custom_call.1} parent=91 // pred_region
          %624 = dma.done [#allocation9], 256
        $region108: #{tpu_custom_call.1} parent=91 // pred_fallthru
          _
        %p625 = scmp.lt.s32.totalorder %s42, 1
        %s626 = scalar_select %p625, %s42, 1
        %s627 = smul.addr %s626, 8
        %s628 = scalar_lea.vmem %s0, %s627
        %p629 = pneg %p63
        %p630 = pneg %p60
        %s631 = sand.u32 %s76, 1
        %s632 = scalar_lea.sflag [#allocation3], %s631
        %s633 = sand.u32 %s76, 1
        %s634 = scalar_lea.vmem [#allocation2], %s633
        %p635 = pneg %p89
        %p636 = pneg %p86
        %p637 = pneg %p110
        %p638 = pneg %p107
        %p639 = pneg %p131
        %p640 = pneg %p128
        %p641 = pneg %p152
        %p642 = pneg %p149
        %p643 = pneg %p173
        %p644 = pneg %p170
        %p645 = pneg %p194
        %p646 = pneg %p191
        %p647 = pneg %p215
        %p648 = pneg %p212
        %p649 = pneg %p236
        %p650 = pneg %p233
        %p651 = pneg %p257
        %p652 = pneg %p254
        %p653 = pneg %p278
        %p654 = pneg %p275
        %p655 = pneg %p299
        %p656 = pneg %p296
        %p657 = pneg %p320
        %p658 = pneg %p317
        %p659 = pneg %p341
        %p660 = pneg %p338
        %p661 = pneg %p362
        %p662 = pneg %p359
        %p663 = pneg %p383
        %p664 = pneg %p380
        %p665 = pneg %p404
        %p666 = pneg %p401
        %p667 = pneg %p425
        %p668 = pneg %p422
        %p669 = pneg %p451
        %p670 = pneg %p448
        %s671 = sand.u32 %s438, 1
        %s672 = scalar_lea.sflag [#allocation4], %s671
        %s673 = sand.u32 %s438, 1
        %s674 = smul.addr %s673, 8
        %s675 = scalar_lea.vmem [#allocation10], %s674
        %p676 = pneg %p477
        %p677 = pneg %p474
        %s678 = sand.u32 %s464, 1
        %s679 = scalar_lea.sflag [#allocation12], %s678
        %s680 = sand.u32 %s464, 1
        %s681 = smul.addr %s680, 32
        %s682 = scalar_lea.vmem [#allocation11], %s681
        %p683 = scmp.lt.s32.totalorder %s42, 1
        %s684 = scalar_select %p683, %s42, 1
        %s685 = smul.addr %s684, 8
        %s686 = scalar_lea.vmem %s0, %s685
        %v688 = vld [vmem:[%s686] sm:$0xff]
        %v689 = vpack.c.bf16 %v688, %v688
        %v690 = vld [vmem:[%s608] sm:$0x1]
        %vm691 = vcmp.eq.f32.partialorder %v690, 0.0
        %v692 = vld [vmem:[%s2] sm:$0xf]
        %v693 = vld [vmem:[%s2 + $0x4] sm:$0xf]
        %v694 = vld [vmem:[%s2 + $0x8] sm:$0xf]
        %v695 = vld [vmem:[%s2 + $0xc] sm:$0xf]
        %v696 = vld [vmem:[%s3] sm:$0x1]
        %v698 = vlaneseq
        %v699 = vshrl.u32 %v698, 7
        %v700 = vsub.s32 0, %v699
        %v701 = vrot.slane %v696, %v700
        %v707 = vunpack.c.l.b16 %v692
        %v708 = vunpack.c.l.b16 %v693
        %v709 = vunpack.c.l.b16 %v694
        %v710 = vunpack.c.l.b16 %v695
        %v711 = vpack.c.b16 %v708, %v707
        %v712 = vpack.c.b16 %v710, %v709
        %vm715 = vcmask 261120
        %v717 = vsel %vm715, %v689, 0
        %719 = vmatprep.subr.bf16.mxu0 0
        %720 = vmatpush1.bf16.msra.mxu0 0
        %721 = vmatprep.subr.bf16.mxu0 0
        %722 = vmatpush1.bf16.msra.mxu0 0
        %723 = vmatprep.subr.bf16.mxu0 0
        %724 = vmatpush1.bf16.msra.mxu0 0
        %725 = vmatprep.subr.bf16.mxu0 0
        %726 = vmatpush1.bf16.msra.mxu0 0
        %727 = vmatprep.subr.bf16.mxu0 0
        %728 = vmatpush1.bf16.msra.mxu0 0
        %729 = vmatprep.subr.bf16.mxu0 0
        %730 = vmatpush1.bf16.msra.mxu0 0
        %731 = vmatprep.subr.bf16.mxu0 0
        %732 = vmatpush1.bf16.msra.mxu0 %v712
        %733 = vmatprep.subr.bf16.mxu0 0
        %734 = vmatpush1.bf16.msra.mxu0 %v711
        %735 = vmatprep.subr.bf16.mxu0 0
        %736 = vmatpush2.bf16.msra.mxu0 0
        %737 = vmatprep.subr.bf16.mxu0 0
        %738 = vmatpush2.bf16.msra.mxu0 0
        %739 = vmatprep.subr.bf16.mxu0 0
        %740 = vmatpush2.bf16.msra.mxu0 0
        %741 = vmatprep.subr.bf16.mxu0 0
        %742 = vmatpush2.bf16.msra.mxu0 0
        %743 = vmatprep.subr.bf16.mxu0 0
        %744 = vmatpush2.bf16.msra.mxu0 0
        %745 = vmatprep.subr.bf16.mxu0 0
        %746 = vmatpush2.bf16.msra.mxu0 0
        %747 = vmatprep.subr.bf16.mxu0 0
        %748 = vmatpush2.bf16.msra.mxu0 0
        %749 = vmatprep.subr.bf16.mxu0 0
        %750 = vmatpush2.bf16.msra.mxu0 0
        %751 = vmatprep.mubr.bf16.mxu0 0
        %752 = vmatmul.mubr.bf16.gmra.mxu0 %v717
        %v753 = vpop.f32.mrf.mxu0
        %v754 = vadd.f32 %v701, %v753
        %v755 = vpop.f32.mrf.mxu0
        %v756 = vpop.f32.mrf.mxu0
        %v757 = vpop.f32.mrf.mxu0
        %758 = vdwg.mxu0
        %v759 = vld [vmem:[%s4] sm:$0xf]
        %v760 = vld [vmem:[%s4 + $0x4] sm:$0xf]
        %v761 = vld [vmem:[%s4 + $0x8] sm:$0xf]
        %v762 = vld [vmem:[%s4 + $0xc] sm:$0xf]
        %v763 = vld [vmem:[%s5] sm:$0x1]
        %v765 = vlaneseq
        %v766 = vshrl.u32 %v765, 7
        %v767 = vsub.s32 0, %v766
        %v768 = vrot.slane %v763, %v767
        %v774 = vunpack.c.l.b16 %v759
        %v775 = vunpack.c.l.b16 %v760
        %v776 = vunpack.c.l.b16 %v761
        %v777 = vunpack.c.l.b16 %v762
        %v778 = vpack.c.b16 %v775, %v774
        %v779 = vpack.c.b16 %v777, %v776
        %782 = vmatprep.subr.bf16.mxu0 0
        %783 = vmatpush1.bf16.msra.mxu0 0
        %784 = vmatprep.subr.bf16.mxu0 0
        %785 = vmatpush1.bf16.msra.mxu0 0
        %786 = vmatprep.subr.bf16.mxu0 0
        %787 = vmatpush1.bf16.msra.mxu0 0
        %788 = vmatprep.subr.bf16.mxu0 0
        %789 = vmatpush1.bf16.msra.mxu0 0
        %790 = vmatprep.subr.bf16.mxu0 0
        %791 = vmatpush1.bf16.msra.mxu0 0
        %792 = vmatprep.subr.bf16.mxu0 0
        %793 = vmatpush1.bf16.msra.mxu0 0
        %794 = vmatprep.subr.bf16.mxu0 0
        %795 = vmatpush1.bf16.msra.mxu0 %v779
        %796 = vmatprep.subr.bf16.mxu0 0
        %797 = vmatpush1.bf16.msra.mxu0 %v778
        %798 = vmatprep.subr.bf16.mxu0 0
        %799 = vmatpush2.bf16.msra.mxu0 0
        %800 = vmatprep.subr.bf16.mxu0 0
        %801 = vmatpush2.bf16.msra.mxu0 0
        %802 = vmatprep.subr.bf16.mxu0 0
        %803 = vmatpush2.bf16.msra.mxu0 0
        %804 = vmatprep.subr.bf16.mxu0 0
        %805 = vmatpush2.bf16.msra.mxu0 0
        %806 = vmatprep.subr.bf16.mxu0 0
        %807 = vmatpush2.bf16.msra.mxu0 0
        %808 = vmatprep.subr.bf16.mxu0 0
        %809 = vmatpush2.bf16.msra.mxu0 0
        %810 = vmatprep.subr.bf16.mxu0 0
        %811 = vmatpush2.bf16.msra.mxu0 0
        %812 = vmatprep.subr.bf16.mxu0 0
        %813 = vmatpush2.bf16.msra.mxu0 0
        %814 = vmatprep.mubr.bf16.mxu0 0
        %815 = vmatmul.mubr.bf16.gmra.mxu0 %v717
        %v816 = vpop.f32.mrf.mxu0
        %v817 = vadd.f32 %v768, %v816
        %v818 = vpop.f32.mrf.mxu0
        %v819 = vpop.f32.mrf.mxu0
        %v820 = vpop.f32.mrf.mxu0
        %821 = vdwg.mxu0
        %v822 = vld [vmem:[#allocation5] sm:$0xf]
        %v823 = vld [vmem:[#allocation5 + $0x4] sm:$0xf]
        %v824 = vld [vmem:[#allocation5 + $0x8] sm:$0xf]
        %v825 = vld [vmem:[#allocation5 + $0xc] sm:$0xf]
        %v826 = vld [vmem:[%s7] sm:$0x1]
        %v828 = vlaneseq
        %v829 = vshrl.u32 %v828, 7
        %v830 = vsub.s32 0, %v829
        %v831 = vrot.slane %v826, %v830
        %v837 = vunpack.c.l.b16 %v822
        %v838 = vunpack.c.l.b16 %v823
        %v839 = vunpack.c.l.b16 %v824
        %v840 = vunpack.c.l.b16 %v825
        %v841 = vpack.c.b16 %v838, %v837
        %v842 = vpack.c.b16 %v840, %v839
        %845 = vmatprep.subr.bf16.mxu0 0
        %846 = vmatpush1.bf16.msra.mxu0 0
        %847 = vmatprep.subr.bf16.mxu0 0
        %848 = vmatpush1.bf16.msra.mxu0 0
        %849 = vmatprep.subr.bf16.mxu0 0
        %850 = vmatpush1.bf16.msra.mxu0 0
        %851 = vmatprep.subr.bf16.mxu0 0
        %852 = vmatpush1.bf16.msra.mxu0 0
        %853 = vmatprep.subr.bf16.mxu0 0
        %854 = vmatpush1.bf16.msra.mxu0 0
        %855 = vmatprep.subr.bf16.mxu0 0
        %856 = vmatpush1.bf16.msra.mxu0 0
        %857 = vmatprep.subr.bf16.mxu0 0
        %858 = vmatpush1.bf16.msra.mxu0 %v842
        %859 = vmatprep.subr.bf16.mxu0 0
        %860 = vmatpush1.bf16.msra.mxu0 %v841
        %861 = vmatprep.subr.bf16.mxu0 0
        %862 = vmatpush2.bf16.msra.mxu0 0
        %863 = vmatprep.subr.bf16.mxu0 0
        %864 = vmatpush2.bf16.msra.mxu0 0
        %865 = vmatprep.subr.bf16.mxu0 0
        %866 = vmatpush2.bf16.msra.mxu0 0
        %867 = vmatprep.subr.bf16.mxu0 0
        %868 = vmatpush2.bf16.msra.mxu0 0
        %869 = vmatprep.subr.bf16.mxu0 0
        %870 = vmatpush2.bf16.msra.mxu0 0
        %871 = vmatprep.subr.bf16.mxu0 0
        %872 = vmatpush2.bf16.msra.mxu0 0
        %873 = vmatprep.subr.bf16.mxu0 0
        %874 = vmatpush2.bf16.msra.mxu0 0
        %875 = vmatprep.subr.bf16.mxu0 0
        %876 = vmatpush2.bf16.msra.mxu0 0
        %877 = vmatprep.mubr.bf16.mxu0 0
        %878 = vmatmul.mubr.bf16.gmra.mxu0 %v717
        %v879 = vpop.f32.mrf.mxu0
        %v880 = vadd.f32 %v831, %v879
        %v881 = vpop.f32.mrf.mxu0
        %v882 = vpop.f32.mrf.mxu0
        %v883 = vpop.f32.mrf.mxu0
        %884 = vdwg.mxu0
        %v885 = vmul.f32 %v754, 0.35355338
        %886 = vxpose.xlu0.b32.start [1/16] %v885, 128
        %887 = vxpose.xlu0.b32.cont [2/16] 0.0, 128
        %888 = vxpose.xlu0.b32.cont [3/16] 0.0, 128
        %889 = vxpose.xlu0.b32.cont [4/16] 0.0, 128
        %890 = vxpose.xlu0.b32.cont [5/16] 0.0, 128
        %891 = vxpose.xlu0.b32.cont [6/16] 0.0, 128
        %892 = vxpose.xlu0.b32.cont [7/16] 0.0, 128
        %893 = vxpose.xlu0.b32.cont [8/16] 0.0, 128
        %894 = vxpose.xlu0.b32.cont [9/16] 0.0, 128
        %895 = vxpose.xlu0.b32.cont [10/16] 0.0, 128
        %896 = vxpose.xlu0.b32.cont [11/16] 0.0, 128
        %897 = vxpose.xlu0.b32.cont [12/16] 0.0, 128
        %898 = vxpose.xlu0.b32.cont [13/16] 0.0, 128
        %899 = vxpose.xlu0.b32.cont [14/16] 0.0, 128
        %900 = vxpose.xlu0.b32.cont [15/16] 0.0, 128
        %901 = vxpose.xlu0.b32.end [16/16] 0.0, 128
        %v902 = vpop.trf.xlu0
        %v903 = vpop.trf.xlu0
        %v904 = vpop.trf.xlu0
        %v905 = vpop.trf.xlu0
        %v906 = vpop.trf.xlu0
        %v907 = vpop.trf.xlu0
        %v908 = vpop.trf.xlu0
        %v909 = vpop.trf.xlu0
        %v910 = vpop.trf.xlu0
        %v911 = vpop.trf.xlu0
        %v912 = vpop.trf.xlu0
        %v913 = vpop.trf.xlu0
        %v914 = vpop.trf.xlu0
        %v915 = vpop.trf.xlu0
        %v916 = vpop.trf.xlu0
        %v917 = vpop.trf.xlu0
        %v918 = vpack.c.bf16 %v902, %v902
        %v919 = vpack.c.bf16 %v903, %v903
        %v920 = vpack.c.bf16 %v904, %v904
        %v921 = vpack.c.bf16 %v905, %v905
        %922 = vxpose.xlu0.b32.start [1/16] %v817, 128
        %923 = vxpose.xlu0.b32.cont [2/16] 0.0, 128
        %924 = vxpose.xlu0.b32.cont [3/16] 0.0, 128
        %925 = vxpose.xlu0.b32.cont [4/16] 0.0, 128
        %926 = vxpose.xlu0.b32.cont [5/16] 0.0, 128
        %927 = vxpose.xlu0.b32.cont [6/16] 0.0, 128
        %928 = vxpose.xlu0.b32.cont [7/16] 0.0, 128
        %929 = vxpose.xlu0.b32.cont [8/16] 0.0, 128
        %930 = vxpose.xlu0.b32.cont [9/16] 0.0, 128
        %931 = vxpose.xlu0.b32.cont [10/16] 0.0, 128
        %932 = vxpose.xlu0.b32.cont [11/16] 0.0, 128
        %933 = vxpose.xlu0.b32.cont [12/16] 0.0, 128
        %934 = vxpose.xlu0.b32.cont [13/16] 0.0, 128
        %935 = vxpose.xlu0.b32.cont [14/16] 0.0, 128
        %936 = vxpose.xlu0.b32.cont [15/16] 0.0, 128
        %937 = vxpose.xlu0.b32.end [16/16] 0.0, 128
        %v938 = vpop.trf.xlu0
        %v939 = vpop.trf.xlu0
        %v940 = vpop.trf.xlu0
        %v941 = vpop.trf.xlu0
        %v942 = vpop.trf.xlu0
        %v943 = vpop.trf.xlu0
        %v944 = vpop.trf.xlu0
        %v945 = vpop.trf.xlu0
        %v946 = vpop.trf.xlu0
        %v947 = vpop.trf.xlu0
        %v948 = vpop.trf.xlu0
        %v949 = vpop.trf.xlu0
        %v950 = vpop.trf.xlu0
        %v951 = vpop.trf.xlu0
        %v952 = vpop.trf.xlu0
        %v953 = vpop.trf.xlu0
        %v954 = vpack.c.bf16 %v938, %v938
        %v955 = vpack.c.bf16 %v939, %v939
        %v956 = vpack.c.bf16 %v940, %v940
        %v957 = vpack.c.bf16 %v941, %v941
        %958 = vxpose.xlu0.b32.start [1/16] %v880, 128
        %959 = vxpose.xlu0.b32.cont [2/16] 0.0, 128
        %960 = vxpose.xlu0.b32.cont [3/16] 0.0, 128
        %961 = vxpose.xlu0.b32.cont [4/16] 0.0, 128
        %962 = vxpose.xlu0.b32.cont [5/16] 0.0, 128
        %963 = vxpose.xlu0.b32.cont [6/16] 0.0, 128
        %964 = vxpose.xlu0.b32.cont [7/16] 0.0, 128
        %965 = vxpose.xlu0.b32.cont [8/16] 0.0, 128
        %966 = vxpose.xlu0.b32.cont [9/16] 0.0, 128
        %967 = vxpose.xlu0.b32.cont [10/16] 0.0, 128
        %968 = vxpose.xlu0.b32.cont [11/16] 0.0, 128
        %969 = vxpose.xlu0.b32.cont [12/16] 0.0, 128
        %970 = vxpose.xlu0.b32.cont [13/16] 0.0, 128
        %971 = vxpose.xlu0.b32.cont [14/16] 0.0, 128
        %972 = vxpose.xlu0.b32.cont [15/16] 0.0, 128
        %973 = vxpose.xlu0.b32.end [16/16] 0.0, 128
        %v974 = vpop.trf.xlu0
        %v975 = vpop.trf.xlu0
        %v976 = vpop.trf.xlu0
        %v977 = vpop.trf.xlu0
        %v978 = vpop.trf.xlu0
        %v979 = vpop.trf.xlu0
        %v980 = vpop.trf.xlu0
        %v981 = vpop.trf.xlu0
        %v982 = vpop.trf.xlu0
        %v983 = vpop.trf.xlu0
        %v984 = vpop.trf.xlu0
        %v985 = vpop.trf.xlu0
        %v986 = vpop.trf.xlu0
        %v987 = vpop.trf.xlu0
        %v988 = vpop.trf.xlu0
        %v989 = vpop.trf.xlu0
        %v990 = vpack.c.bf16 %v974, %v974
        %v991 = vpack.c.bf16 %v975, %v975
        %v992 = vpack.c.bf16 %v976, %v976
        %v993 = vpack.c.bf16 %v977, %v977
        %994 = vxpose.xlu0.c.b16.start [1/8] %v918, 128
        %995 = vxpose.xlu0.c.b16.cont [2/8] 0, 128
        %996 = vxpose.xlu0.c.b16.cont [3/8] 0, 128
        %997 = vxpose.xlu0.c.b16.cont [4/8] 0, 128
        %998 = vxpose.xlu0.c.b16.cont [5/8] 0, 128
        %999 = vxpose.xlu0.c.b16.cont [6/8] 0, 128
        %1000 = vxpose.xlu0.c.b16.cont [7/8] 0, 128
        %1001 = vxpose.xlu0.c.b16.end [8/8] 0, 128
        %v1002 = vpop.trf.xlu0
        %v1003 = vpop.trf.xlu0
        %v1004 = vpop.trf.xlu0
        %v1005 = vpop.trf.xlu0
        %v1006 = vpop.trf.xlu0
        %v1007 = vpop.trf.xlu0
        %v1008 = vpop.trf.xlu0
        %v1009 = vpop.trf.xlu0
        %vm1010 = vcmask 64512
        %v1012 = vsel %vm1010, %v1002, 0
        %vm1014 = vcmask 1043456
        %v1016 = vsel %vm1014, %v954, 0
        %1018 = vmatprep.subr.bf16.mxu0 0
        %1019 = vmatpush1.bf16.msra.mxu0 0
        %1020 = vmatprep.subr.bf16.mxu0 0
        %1021 = vmatpush1.bf16.msra.mxu0 0
        %1022 = vmatprep.subr.bf16.mxu0 0
        %1023 = vmatpush1.bf16.msra.mxu0 0
        %1024 = vmatprep.subr.bf16.mxu0 0
        %1025 = vmatpush1.bf16.msra.mxu0 0
        %1026 = vmatprep.subr.bf16.mxu0 0
        %1027 = vmatpush1.bf16.msra.mxu0 0
        %1028 = vmatprep.subr.bf16.mxu0 0
        %1029 = vmatpush1.bf16.msra.mxu0 0
        %1030 = vmatprep.subr.bf16.mxu0 0
        %1031 = vmatpush1.bf16.msra.mxu0 0
        %1032 = vmatprep.subr.bf16.mxu0 0
        %1033 = vmatpush1.bf16.msra.mxu0 %v1016
        %1034 = vmatprep.subr.bf16.mxu0 0
        %1035 = vmatpush2.bf16.msra.mxu0 0
        %1036 = vmatprep.subr.bf16.mxu0 0
        %1037 = vmatpush2.bf16.msra.mxu0 0
        %1038 = vmatprep.subr.bf16.mxu0 0
        %1039 = vmatpush2.bf16.msra.mxu0 0
        %1040 = vmatprep.subr.bf16.mxu0 0
        %1041 = vmatpush2.bf16.msra.mxu0 0
        %1042 = vmatprep.subr.bf16.mxu0 0
        %1043 = vmatpush2.bf16.msra.mxu0 0
        %1044 = vmatprep.subr.bf16.mxu0 0
        %1045 = vmatpush2.bf16.msra.mxu0 0
        %1046 = vmatprep.subr.bf16.mxu0 0
        %1047 = vmatpush2.bf16.msra.mxu0 0
        %1048 = vmatprep.subr.bf16.mxu0 0
        %1049 = vmatpush2.bf16.msra.mxu0 0
        %1050 = vmatprep.mubr.bf16.mxu0 0
        %1051 = vmatmul.mubr.bf16.gmra.mxu0 %v1012
        %v1052 = vpop.f32.mrf.mxu0
        %v1053 = vadd.f32 0.0, %v1052
        %v1054 = vpop.f32.mrf.mxu0
        %v1055 = vpop.f32.mrf.mxu0
        %v1056 = vpop.f32.mrf.mxu0
        %1057 = vdwg.mxu0
        %1058 = vxpose.xlu0.c.b16.start [1/8] %v919, 128
        %1059 = vxpose.xlu0.c.b16.cont [2/8] 0, 128
        %1060 = vxpose.xlu0.c.b16.cont [3/8] 0, 128
        %1061 = vxpose.xlu0.c.b16.cont [4/8] 0, 128
        %1062 = vxpose.xlu0.c.b16.cont [5/8] 0, 128
        %1063 = vxpose.xlu0.c.b16.cont [6/8] 0, 128
        %1064 = vxpose.xlu0.c.b16.cont [7/8] 0, 128
        %1065 = vxpose.xlu0.c.b16.end [8/8] 0, 128
        %v1066 = vpop.trf.xlu0
        %v1067 = vpop.trf.xlu0
        %v1068 = vpop.trf.xlu0
        %v1069 = vpop.trf.xlu0
        %v1070 = vpop.trf.xlu0
        %v1071 = vpop.trf.xlu0
        %v1072 = vpop.trf.xlu0
        %v1073 = vpop.trf.xlu0
        %v1075 = vsel %vm1010, %v1066, 0
        %v1078 = vsel %vm1014, %v955, 0
        %1080 = vmatprep.subr.bf16.mxu0 0
        %1081 = vmatpush1.bf16.msra.mxu0 0
        %1082 = vmatprep.subr.bf16.mxu0 0
        %1083 = vmatpush1.bf16.msra.mxu0 0
        %1084 = vmatprep.subr.bf16.mxu0 0
        %1085 = vmatpush1.bf16.msra.mxu0 0
        %1086 = vmatprep.subr.bf16.mxu0 0
        %1087 = vmatpush1.bf16.msra.mxu0 0
        %1088 = vmatprep.subr.bf16.mxu0 0
        %1089 = vmatpush1.bf16.msra.mxu0 0
        %1090 = vmatprep.subr.bf16.mxu0 0
        %1091 = vmatpush1.bf16.msra.mxu0 0
        %1092 = vmatprep.subr.bf16.mxu0 0
        %1093 = vmatpush1.bf16.msra.mxu0 0
        %1094 = vmatprep.subr.bf16.mxu0 0
        %1095 = vmatpush1.bf16.msra.mxu0 %v1078
        %1096 = vmatprep.subr.bf16.mxu0 0
        %1097 = vmatpush2.bf16.msra.mxu0 0
        %1098 = vmatprep.subr.bf16.mxu0 0
        %1099 = vmatpush2.bf16.msra.mxu0 0
        %1100 = vmatprep.subr.bf16.mxu0 0
        %1101 = vmatpush2.bf16.msra.mxu0 0
        %1102 = vmatprep.subr.bf16.mxu0 0
        %1103 = vmatpush2.bf16.msra.mxu0 0
        %1104 = vmatprep.subr.bf16.mxu0 0
        %1105 = vmatpush2.bf16.msra.mxu0 0
        %1106 = vmatprep.subr.bf16.mxu0 0
        %1107 = vmatpush2.bf16.msra.mxu0 0
        %1108 = vmatprep.subr.bf16.mxu0 0
        %1109 = vmatpush2.bf16.msra.mxu0 0
        %1110 = vmatprep.subr.bf16.mxu0 0
        %1111 = vmatpush2.bf16.msra.mxu0 0
        %1112 = vmatprep.mubr.bf16.mxu0 0
        %1113 = vmatmul.mubr.bf16.gmra.mxu0 %v1075
        %v1114 = vpop.f32.mrf.mxu0
        %v1115 = vadd.f32 0.0, %v1114
        %v1116 = vpop.f32.mrf.mxu0
        %v1117 = vpop.f32.mrf.mxu0
        %v1118 = vpop.f32.mrf.mxu0
        %1119 = vdwg.mxu0
        %1120 = vxpose.xlu0.c.b16.start [1/8] %v920, 128
        %1121 = vxpose.xlu0.c.b16.cont [2/8] 0, 128
        %1122 = vxpose.xlu0.c.b16.cont [3/8] 0, 128
        %1123 = vxpose.xlu0.c.b16.cont [4/8] 0, 128
        %1124 = vxpose.xlu0.c.b16.cont [5/8] 0, 128
        %1125 = vxpose.xlu0.c.b16.cont [6/8] 0, 128
        %1126 = vxpose.xlu0.c.b16.cont [7/8] 0, 128
        %1127 = vxpose.xlu0.c.b16.end [8/8] 0, 128
        %v1128 = vpop.trf.xlu0
        %v1129 = vpop.trf.xlu0
        %v1130 = vpop.trf.xlu0
        %v1131 = vpop.trf.xlu0
        %v1132 = vpop.trf.xlu0
        %v1133 = vpop.trf.xlu0
        %v1134 = vpop.trf.xlu0
        %v1135 = vpop.trf.xlu0
        %v1137 = vsel %vm1010, %v1128, 0
        %v1140 = vsel %vm1014, %v956, 0
        %1142 = vmatprep.subr.bf16.mxu0 0
        %1143 = vmatpush1.bf16.msra.mxu0 0
        %1144 = vmatprep.subr.bf16.mxu0 0
        %1145 = vmatpush1.bf16.msra.mxu0 0
        %1146 = vmatprep.subr.bf16.mxu0 0
        %1147 = vmatpush1.bf16.msra.mxu0 0
        %1148 = vmatprep.subr.bf16.mxu0 0
        %1149 = vmatpush1.bf16.msra.mxu0 0
        %1150 = vmatprep.subr.bf16.mxu0 0
        %1151 = vmatpush1.bf16.msra.mxu0 0
        %1152 = vmatprep.subr.bf16.mxu0 0
        %1153 = vmatpush1.bf16.msra.mxu0 0
        %1154 = vmatprep.subr.bf16.mxu0 0
        %1155 = vmatpush1.bf16.msra.mxu0 0
        %1156 = vmatprep.subr.bf16.mxu0 0
        %1157 = vmatpush1.bf16.msra.mxu0 %v1140
        %1158 = vmatprep.subr.bf16.mxu0 0
        %1159 = vmatpush2.bf16.msra.mxu0 0
        %1160 = vmatprep.subr.bf16.mxu0 0
        %1161 = vmatpush2.bf16.msra.mxu0 0
        %1162 = vmatprep.subr.bf16.mxu0 0
        %1163 = vmatpush2.bf16.msra.mxu0 0
        %1164 = vmatprep.subr.bf16.mxu0 0
        %1165 = vmatpush2.bf16.msra.mxu0 0
        %1166 = vmatprep.subr.bf16.mxu0 0
        %1167 = vmatpush2.bf16.msra.mxu0 0
        %1168 = vmatprep.subr.bf16.mxu0 0
        %1169 = vmatpush2.bf16.msra.mxu0 0
        %1170 = vmatprep.subr.bf16.mxu0 0
        %1171 = vmatpush2.bf16.msra.mxu0 0
        %1172 = vmatprep.subr.bf16.mxu0 0
        %1173 = vmatpush2.bf16.msra.mxu0 0
        %1174 = vmatprep.mubr.bf16.mxu0 0
        %1175 = vmatmul.mubr.bf16.gmra.mxu0 %v1137
        %v1176 = vpop.f32.mrf.mxu0
        %v1177 = vadd.f32 0.0, %v1176
        %v1178 = vpop.f32.mrf.mxu0
        %v1179 = vpop.f32.mrf.mxu0
        %v1180 = vpop.f32.mrf.mxu0
        %1181 = vdwg.mxu0
        %1182 = vxpose.xlu0.c.b16.start [1/8] %v921, 128
        %1183 = vxpose.xlu0.c.b16.cont [2/8] 0, 128
        %1184 = vxpose.xlu0.c.b16.cont [3/8] 0, 128
        %1185 = vxpose.xlu0.c.b16.cont [4/8] 0, 128
        %1186 = vxpose.xlu0.c.b16.cont [5/8] 0, 128
        %1187 = vxpose.xlu0.c.b16.cont [6/8] 0, 128
        %1188 = vxpose.xlu0.c.b16.cont [7/8] 0, 128
        %1189 = vxpose.xlu0.c.b16.end [8/8] 0, 128
        %v1190 = vpop.trf.xlu0
        %v1191 = vpop.trf.xlu0
        %v1192 = vpop.trf.xlu0
        %v1193 = vpop.trf.xlu0
        %v1194 = vpop.trf.xlu0
        %v1195 = vpop.trf.xlu0
        %v1196 = vpop.trf.xlu0
        %v1197 = vpop.trf.xlu0
        %v1199 = vsel %vm1010, %v1190, 0
        %v1202 = vsel %vm1014, %v957, 0
        %1204 = vmatprep.subr.bf16.mxu0 0
        %1205 = vmatpush1.bf16.msra.mxu0 0
        %1206 = vmatprep.subr.bf16.mxu0 0
        %1207 = vmatpush1.bf16.msra.mxu0 0
        %1208 = vmatprep.subr.bf16.mxu0 0
        %1209 = vmatpush1.bf16.msra.mxu0 0
        %1210 = vmatprep.subr.bf16.mxu0 0
        %1211 = vmatpush1.bf16.msra.mxu0 0
        %1212 = vmatprep.subr.bf16.mxu0 0
        %1213 = vmatpush1.bf16.msra.mxu0 0
        %1214 = vmatprep.subr.bf16.mxu0 0
        %1215 = vmatpush1.bf16.msra.mxu0 0
        %1216 = vmatprep.subr.bf16.mxu0 0
        %1217 = vmatpush1.bf16.msra.mxu0 0
        %1218 = vmatprep.subr.bf16.mxu0 0
        %1219 = vmatpush1.bf16.msra.mxu0 %v1202
        %1220 = vmatprep.subr.bf16.mxu0 0
        %1221 = vmatpush2.bf16.msra.mxu0 0
        %1222 = vmatprep.subr.bf16.mxu0 0
        %1223 = vmatpush2.bf16.msra.mxu0 0
        %1224 = vmatprep.subr.bf16.mxu0 0
        %1225 = vmatpush2.bf16.msra.mxu0 0
        %1226 = vmatprep.subr.bf16.mxu0 0
        %1227 = vmatpush2.bf16.msra.mxu0 0
        %1228 = vmatprep.subr.bf16.mxu0 0
        %1229 = vmatpush2.bf16.msra.mxu0 0
        %1230 = vmatprep.subr.bf16.mxu0 0
        %1231 = vmatpush2.bf16.msra.mxu0 0
        %1232 = vmatprep.subr.bf16.mxu0 0
        %1233 = vmatpush2.bf16.msra.mxu0 0
        %1234 = vmatprep.subr.bf16.mxu0 0
        %1235 = vmatpush2.bf16.msra.mxu0 0
        %1236 = vmatprep.mubr.bf16.mxu0 0
        %1237 = vmatmul.mubr.bf16.gmra.mxu0 %v1199
        %v1238 = vpop.f32.mrf.mxu0
        %v1239 = vadd.f32 0.0, %v1238
        %v1240 = vpop.f32.mrf.mxu0
        %v1241 = vpop.f32.mrf.mxu0
        %v1242 = vpop.f32.mrf.mxu0
        %1243 = vdwg.mxu0
        %v1244 = vsel %vm691, 1, 0
        %v1245 = vlaneseq
        %v1246 = vshrl.u32 %v1245, 7
        %v1247 = vsub.s32 0, %v1246
        %v1248 = vrot.slane %v1244, %v1247
        %vm1249 = vcmp.eq.s32.totalorder %v1248, 1
        %v1250 = vsel %vm1249, -1e+09, %v1053
        %v1251 = vsel %vm1249, -1e+09, %v1115
        %v1252 = vsel %vm1249, -1e+09, %v1177
        %v1253 = vsel %vm1249, -1e+09, %v1239
        %v1254 = vsel %vm1010, %v1250, -inf
        %1255 = vmax.xlane.f32.xlu0 %v1254
        %v1256 = vpop.xlane.xlu0 %1255
        %v1257 = vsel %vm1010, %v1251, -inf
        %1258 = vmax.xlane.f32.xlu0 %v1257
        %v1259 = vpop.xlane.xlu0 %1258
        %v1260 = vsel %vm1010, %v1252, -inf
        %1261 = vmax.xlane.f32.xlu0 %v1260
        %v1262 = vpop.xlane.xlu0 %1261
        %v1263 = vsel %vm1010, %v1253, -inf
        %1264 = vmax.xlane.f32.xlu0 %v1263
        %v1265 = vpop.xlane.xlu0 %1264
        %v1266 = vsub.f32 %v1250, %v1256
        %v1267 = vsub.f32 %v1251, %v1259
        %v1268 = vsub.f32 %v1252, %v1262
        %v1269 = vsub.f32 %v1253, %v1265
        %v1270 = vmul.f32 %v1266, 1.442695
        %v1271 = vpow.pop %v1270
        %v1272 = vmul.f32 %v1267, 1.442695
        %v1273 = vpow.pop %v1272
        %v1274 = vmul.f32 %v1268, 1.442695
        %v1275 = vpow.pop %v1274
        %v1276 = vmul.f32 %v1269, 1.442695
        %v1277 = vpow.pop %v1276
        %v1278 = vsel %vm1010, %v1271, 0.0
        %1279 = vadd.xlane.f32.xlu0 %v1278
        %v1280 = vpop.xlane.xlu0 %1279
        %v1281 = vsel %vm1010, %v1273, 0.0
        %1282 = vadd.xlane.f32.xlu0 %v1281
        %v1283 = vpop.xlane.xlu0 %1282
        %v1284 = vsel %vm1010, %v1275, 0.0
        %1285 = vadd.xlane.f32.xlu0 %v1284
        %v1286 = vpop.xlane.xlu0 %1285
        %v1287 = vsel %vm1010, %v1277, 0.0
        %1288 = vadd.xlane.f32.xlu0 %v1287
        %v1289 = vpop.xlane.xlu0 %1288
        %v1290 = vrcp.pop %v1280
        %v1291 = vrcp.pop %v1283
        %v1292 = vrcp.pop %v1286
        %v1293 = vrcp.pop %v1289
        %v1294 = vmul.f32 %v1271, %v1290
        %v1295 = vmul.f32 %v1273, %v1291
        %v1296 = vmul.f32 %v1275, %v1292
        %v1297 = vmul.f32 %v1277, %v1293
        %1298 = vst.msk [vmem:[%s682] sm:$0xff] %vm1010, %v1294
        %1299 = vst.msk [vmem:[%s682 + $0x8] sm:$0xff] %vm1010, %v1295
        %1300 = vst.msk [vmem:[%s682 + $0x10] sm:$0xff] %vm1010, %v1296
        %1301 = vst.msk [vmem:[%s682 + $0x18] sm:$0xff] %vm1010, %v1297
        %v1302 = vpack.c.bf16 %v1294, %v1294
        %v1303 = vpack.c.bf16 %v1295, %v1295
        %v1304 = vpack.c.bf16 %v1296, %v1296
        %v1305 = vpack.c.bf16 %v1297, %v1297
        %v1307 = vsel %vm1010, %v990, 0
        %v1310 = vsel %vm1010, %v1302, 0
        %1312 = vmatprep.subr.bf16.mxu0 0
        %1313 = vmatpush1.bf16.xpose.msra.mxu0 0
        %1314 = vmatprep.subr.bf16.mxu0 0
        %1315 = vmatpush1.bf16.xpose.msra.mxu0 0
        %1316 = vmatprep.subr.bf16.mxu0 0
        %1317 = vmatpush1.bf16.xpose.msra.mxu0 0
        %1318 = vmatprep.subr.bf16.mxu0 0
        %1319 = vmatpush1.bf16.xpose.msra.mxu0 0
        %1320 = vmatprep.subr.bf16.mxu0 0
        %1321 = vmatpush1.bf16.xpose.msra.mxu0 0
        %1322 = vmatprep.subr.bf16.mxu0 0
        %1323 = vmatpush1.bf16.xpose.msra.mxu0 0
        %1324 = vmatprep.subr.bf16.mxu0 0
        %1325 = vmatpush1.bf16.xpose.msra.mxu0 0
        %1326 = vmatprep.subr.bf16.mxu0 0
        %1327 = vmatpush1.bf16.xpose.msra.mxu0 %v1310
        %1328 = vmatprep.subr.bf16.mxu0 0
        %1329 = vmatpush2.bf16.xpose.msra.mxu0 0
        %1330 = vmatprep.subr.bf16.mxu0 0
        %1331 = vmatpush2.bf16.xpose.msra.mxu0 0
        %1332 = vmatprep.subr.bf16.mxu0 0
        %1333 = vmatpush2.bf16.xpose.msra.mxu0 0
        %1334 = vmatprep.subr.bf16.mxu0 0
        %1335 = vmatpush2.bf16.xpose.msra.mxu0 0
        %1336 = vmatprep.subr.bf16.mxu0 0
        %1337 = vmatpush2.bf16.xpose.msra.mxu0 0
        %1338 = vmatprep.subr.bf16.mxu0 0
        %1339 = vmatpush2.bf16.xpose.msra.mxu0 0
        %1340 = vmatprep.subr.bf16.mxu0 0
        %1341 = vmatpush2.bf16.xpose.msra.mxu0 0
        %1342 = vmatprep.subr.bf16.mxu0 0
        %1343 = vmatpush2.bf16.xpose.msra.mxu0 0
        %1344 = vmatprep.mubr.bf16.mxu0 0
        %1345 = vmatmul.mubr.bf16.gmra.mxu0 %v1307
        %v1346 = vpop.f32.mrf.mxu0
        %v1347 = vadd.f32 0.0, %v1346
        %v1348 = vpop.f32.mrf.mxu0
        %v1349 = vpop.f32.mrf.mxu0
        %v1350 = vpop.f32.mrf.mxu0
        %1351 = vdwg.mxu0
        %v1353 = vsel %vm1010, %v991, 0
        %v1356 = vsel %vm1010, %v1303, 0
        %1358 = vmatprep.subr.bf16.mxu0 0
        %1359 = vmatpush1.bf16.xpose.msra.mxu0 0
        %1360 = vmatprep.subr.bf16.mxu0 0
        %1361 = vmatpush1.bf16.xpose.msra.mxu0 0
        %1362 = vmatprep.subr.bf16.mxu0 0
        %1363 = vmatpush1.bf16.xpose.msra.mxu0 0
        %1364 = vmatprep.subr.bf16.mxu0 0
        %1365 = vmatpush1.bf16.xpose.msra.mxu0 0
        %1366 = vmatprep.subr.bf16.mxu0 0
        %1367 = vmatpush1.bf16.xpose.msra.mxu0 0
        %1368 = vmatprep.subr.bf16.mxu0 0
        %1369 = vmatpush1.bf16.xpose.msra.mxu0 0
        %1370 = vmatprep.subr.bf16.mxu0 0
        %1371 = vmatpush1.bf16.xpose.msra.mxu0 0
        %1372 = vmatprep.subr.bf16.mxu0 0
        %1373 = vmatpush1.bf16.xpose.msra.mxu0 %v1356
        %1374 = vmatprep.subr.bf16.mxu0 0
        %1375 = vmatpush2.bf16.xpose.msra.mxu0 0
        %1376 = vmatprep.subr.bf16.mxu0 0
        %1377 = vmatpush2.bf16.xpose.msra.mxu0 0
        %1378 = vmatprep.subr.bf16.mxu0 0
        %1379 = vmatpush2.bf16.xpose.msra.mxu0 0
        %1380 = vmatprep.subr.bf16.mxu0 0
        %1381 = vmatpush2.bf16.xpose.msra.mxu0 0
        %1382 = vmatprep.subr.bf16.mxu0 0
        %1383 = vmatpush2.bf16.xpose.msra.mxu0 0
        %1384 = vmatprep.subr.bf16.mxu0 0
        %1385 = vmatpush2.bf16.xpose.msra.mxu0 0
        %1386 = vmatprep.subr.bf16.mxu0 0
        %1387 = vmatpush2.bf16.xpose.msra.mxu0 0
        %1388 = vmatprep.subr.bf16.mxu0 0
        %1389 = vmatpush2.bf16.xpose.msra.mxu0 0
        %1390 = vmatprep.mubr.bf16.mxu0 0
        %1391 = vmatmul.mubr.bf16.gmra.mxu0 %v1353
        %v1392 = vpop.f32.mrf.mxu0
        %v1393 = vadd.f32 0.0, %v1392
        %v1394 = vpop.f32.mrf.mxu0
        %v1395 = vpop.f32.mrf.mxu0
        %v1396 = vpop.f32.mrf.mxu0
        %1397 = vdwg.mxu0
        %v1399 = vsel %vm1010, %v992, 0
        %v1402 = vsel %vm1010, %v1304, 0
        %1404 = vmatprep.subr.bf16.mxu0 0
        %1405 = vmatpush1.bf16.xpose.msra.mxu0 0
        %1406 = vmatprep.subr.bf16.mxu0 0
        %1407 = vmatpush1.bf16.xpose.msra.mxu0 0
        %1408 = vmatprep.subr.bf16.mxu0 0
        %1409 = vmatpush1.bf16.xpose.msra.mxu0 0
        %1410 = vmatprep.subr.bf16.mxu0 0
        %1411 = vmatpush1.bf16.xpose.msra.mxu0 0
        %1412 = vmatprep.subr.bf16.mxu0 0
        %1413 = vmatpush1.bf16.xpose.msra.mxu0 0
        %1414 = vmatprep.subr.bf16.mxu0 0
        %1415 = vmatpush1.bf16.xpose.msra.mxu0 0
        %1416 = vmatprep.subr.bf16.mxu0 0
        %1417 = vmatpush1.bf16.xpose.msra.mxu0 0
        %1418 = vmatprep.subr.bf16.mxu0 0
        %1419 = vmatpush1.bf16.xpose.msra.mxu0 %v1402
        %1420 = vmatprep.subr.bf16.mxu0 0
        %1421 = vmatpush2.bf16.xpose.msra.mxu0 0
        %1422 = vmatprep.subr.bf16.mxu0 0
        %1423 = vmatpush2.bf16.xpose.msra.mxu0 0
        %1424 = vmatprep.subr.bf16.mxu0 0
        %1425 = vmatpush2.bf16.xpose.msra.mxu0 0
        %1426 = vmatprep.subr.bf16.mxu0 0
        %1427 = vmatpush2.bf16.xpose.msra.mxu0 0
        %1428 = vmatprep.subr.bf16.mxu0 0
        %1429 = vmatpush2.bf16.xpose.msra.mxu0 0
        %1430 = vmatprep.subr.bf16.mxu0 0
        %1431 = vmatpush2.bf16.xpose.msra.mxu0 0
        %1432 = vmatprep.subr.bf16.mxu0 0
        %1433 = vmatpush2.bf16.xpose.msra.mxu0 0
        %1434 = vmatprep.subr.bf16.mxu0 0
        %1435 = vmatpush2.bf16.xpose.msra.mxu0 0
        %1436 = vmatprep.mubr.bf16.mxu0 0
        %1437 = vmatmul.mubr.bf16.gmra.mxu0 %v1399
        %v1438 = vpop.f32.mrf.mxu0
        %v1439 = vadd.f32 0.0, %v1438
        %v1440 = vpop.f32.mrf.mxu0
        %v1441 = vpop.f32.mrf.mxu0
        %v1442 = vpop.f32.mrf.mxu0
        %1443 = vdwg.mxu0
        %v1445 = vsel %vm1010, %v993, 0
        %v1448 = vsel %vm1010, %v1305, 0
        %1450 = vmatprep.subr.bf16.mxu0 0
        %1451 = vmatpush1.bf16.xpose.msra.mxu0 0
        %1452 = vmatprep.subr.bf16.mxu0 0
        %1453 = vmatpush1.bf16.xpose.msra.mxu0 0
        %1454 = vmatprep.subr.bf16.mxu0 0
        %1455 = vmatpush1.bf16.xpose.msra.mxu0 0
        %1456 = vmatprep.subr.bf16.mxu0 0
        %1457 = vmatpush1.bf16.xpose.msra.mxu0 0
        %1458 = vmatprep.subr.bf16.mxu0 0
        %1459 = vmatpush1.bf16.xpose.msra.mxu0 0
        %1460 = vmatprep.subr.bf16.mxu0 0
        %1461 = vmatpush1.bf16.xpose.msra.mxu0 0
        %1462 = vmatprep.subr.bf16.mxu0 0
        %1463 = vmatpush1.bf16.xpose.msra.mxu0 0
        %1464 = vmatprep.subr.bf16.mxu0 0
        %1465 = vmatpush1.bf16.xpose.msra.mxu0 %v1448
        %1466 = vmatprep.subr.bf16.mxu0 0
        %1467 = vmatpush2.bf16.xpose.msra.mxu0 0
        %1468 = vmatprep.subr.bf16.mxu0 0
        %1469 = vmatpush2.bf16.xpose.msra.mxu0 0
        %1470 = vmatprep.subr.bf16.mxu0 0
        %1471 = vmatpush2.bf16.xpose.msra.mxu0 0
        %1472 = vmatprep.subr.bf16.mxu0 0
        %1473 = vmatpush2.bf16.xpose.msra.mxu0 0
        %1474 = vmatprep.subr.bf16.mxu0 0
        %1475 = vmatpush2.bf16.xpose.msra.mxu0 0
        %1476 = vmatprep.subr.bf16.mxu0 0
        %1477 = vmatpush2.bf16.xpose.msra.mxu0 0
        %1478 = vmatprep.subr.bf16.mxu0 0
        %1479 = vmatpush2.bf16.xpose.msra.mxu0 0
        %1480 = vmatprep.subr.bf16.mxu0 0
        %1481 = vmatpush2.bf16.xpose.msra.mxu0 0
        %1482 = vmatprep.mubr.bf16.mxu0 0
        %1483 = vmatmul.mubr.bf16.gmra.mxu0 %v1445
        %v1484 = vpop.f32.mrf.mxu0
        %v1485 = vadd.f32 0.0, %v1484
        %v1486 = vpop.f32.mrf.mxu0
        %v1487 = vpop.f32.mrf.mxu0
        %v1488 = vpop.f32.mrf.mxu0
        %1489 = vdwg.mxu0
        %1490 = vxpose.xlu0.b32.start [1/16] %v1347, 128
        %1491 = vxpose.xlu0.b32.cont [2/16] %v1393, 128
        %1492 = vxpose.xlu0.b32.cont [3/16] %v1439, 128
        %1493 = vxpose.xlu0.b32.cont [4/16] %v1485, 128
        %1494 = vxpose.xlu0.b32.cont [5/16] 0.0, 128
        %1495 = vxpose.xlu0.b32.cont [6/16] 0.0, 128
        %1496 = vxpose.xlu0.b32.cont [7/16] 0.0, 128
        %1497 = vxpose.xlu0.b32.cont [8/16] 0.0, 128
        %1498 = vxpose.xlu0.b32.cont [9/16] 0.0, 128
        %1499 = vxpose.xlu0.b32.cont [10/16] 0.0, 128
        %1500 = vxpose.xlu0.b32.cont [11/16] 0.0, 128
        %1501 = vxpose.xlu0.b32.cont [12/16] 0.0, 128
        %1502 = vxpose.xlu0.b32.cont [13/16] 0.0, 128
        %1503 = vxpose.xlu0.b32.cont [14/16] 0.0, 128
        %1504 = vxpose.xlu0.b32.cont [15/16] 0.0, 128
        %1505 = vxpose.xlu0.b32.end [16/16] 0.0, 128
        %v1506 = vpop.trf.xlu0
        %v1507 = vpop.trf.xlu0
        %v1508 = vpop.trf.xlu0
        %v1509 = vpop.trf.xlu0
        %v1510 = vpop.trf.xlu0
        %v1511 = vpop.trf.xlu0
        %v1512 = vpop.trf.xlu0
        %v1513 = vpop.trf.xlu0
        %v1514 = vpop.trf.xlu0
        %v1515 = vpop.trf.xlu0
        %v1516 = vpop.trf.xlu0
        %v1517 = vpop.trf.xlu0
        %v1518 = vpop.trf.xlu0
        %v1519 = vpop.trf.xlu0
        %v1520 = vpop.trf.xlu0
        %v1521 = vpop.trf.xlu0
        %v1522 = vpack.c.bf16 %v1506, %v1506
        %v1523 = vld [vmem:[#allocation7] sm:$0xf]
        %v1524 = vld [vmem:[#allocation7 + $0x4] sm:$0xf]
        %v1525 = vld [vmem:[#allocation7 + $0x8] sm:$0xf]
        %v1526 = vld [vmem:[#allocation7 + $0xc] sm:$0xf]
        %v1527 = vld [vmem:[%s9] sm:$0x1]
        %v1529 = vlaneseq
        %v1530 = vshrl.u32 %v1529, 7
        %v1531 = vsub.s32 0, %v1530
        %v1532 = vrot.slane %v1527, %v1531
        %v1538 = vunpack.c.l.b16 %v1523
        %v1539 = vunpack.c.l.b16 %v1524
        %v1540 = vunpack.c.l.b16 %v1525
        %v1541 = vunpack.c.l.b16 %v1526
        %v1542 = vpack.c.b16 %v1539, %v1538
        %v1543 = vpack.c.b16 %v1541, %v1540
        %v1547 = vsel %vm715, %v1522, 0
        %1549 = vmatprep.subr.bf16.mxu0 0
        %1550 = vmatpush1.bf16.msra.mxu0 0
        %1551 = vmatprep.subr.bf16.mxu0 0
        %1552 = vmatpush1.bf16.msra.mxu0 0
        %1553 = vmatprep.subr.bf16.mxu0 0
        %1554 = vmatpush1.bf16.msra.mxu0 0
        %1555 = vmatprep.subr.bf16.mxu0 0
        %1556 = vmatpush1.bf16.msra.mxu0 0
        %1557 = vmatprep.subr.bf16.mxu0 0
        %1558 = vmatpush1.bf16.msra.mxu0 0
        %1559 = vmatprep.subr.bf16.mxu0 0
        %1560 = vmatpush1.bf16.msra.mxu0 0
        %1561 = vmatprep.subr.bf16.mxu0 0
        %1562 = vmatpush1.bf16.msra.mxu0 %v1543
        %1563 = vmatprep.subr.bf16.mxu0 0
        %1564 = vmatpush1.bf16.msra.mxu0 %v1542
        %1565 = vmatprep.subr.bf16.mxu0 0
        %1566 = vmatpush2.bf16.msra.mxu0 0
        %1567 = vmatprep.subr.bf16.mxu0 0
        %1568 = vmatpush2.bf16.msra.mxu0 0
        %1569 = vmatprep.subr.bf16.mxu0 0
        %1570 = vmatpush2.bf16.msra.mxu0 0
        %1571 = vmatprep.subr.bf16.mxu0 0
        %1572 = vmatpush2.bf16.msra.mxu0 0
        %1573 = vmatprep.subr.bf16.mxu0 0
        %1574 = vmatpush2.bf16.msra.mxu0 0
        %1575 = vmatprep.subr.bf16.mxu0 0
        %1576 = vmatpush2.bf16.msra.mxu0 0
        %1577 = vmatprep.subr.bf16.mxu0 0
        %1578 = vmatpush2.bf16.msra.mxu0 0
        %1579 = vmatprep.subr.bf16.mxu0 0
        %1580 = vmatpush2.bf16.msra.mxu0 0
        %1581 = vmatprep.mubr.bf16.mxu0 0
        %1582 = vmatmul.mubr.bf16.gmra.mxu0 %v1547
        %v1583 = vpop.f32.mrf.mxu0
        %v1584 = vadd.f32 %v1532, %v1583
        %v1585 = vpop.f32.mrf.mxu0
        %v1586 = vpop.f32.mrf.mxu0
        %v1587 = vpop.f32.mrf.mxu0
        %1588 = vdwg.mxu0
        %v1589 = vadd.f32 %v1584, %v688
        %v1590 = vsel %vm715, %v1589, 0.0
        %1591 = vadd.xlane.f32.xlu0 %v1590
        %v1592 = vpop.xlane.xlu0 %1591
        %v1593 = vrcp.pop 32.0
        %v1594 = vmul.f32 %v1592, %v1593
        %v1595 = vsub.f32 %v1589, %v1594
        %v1596 = vmul.f32 %v1595, %v1595
        %v1597 = vsel %vm715, %v1596, 0.0
        %1598 = vadd.xlane.f32.xlu0 %v1597
        %v1599 = vpop.xlane.xlu0 %1598
        %v1600 = vmul.f32 %v1599, %v1593
        %v1601 = vadd.f32 %v1600, 1e-05
        %v1602 = vrsqrt.pop %v1601
        %v1603 = vmul.f32 %v1595, %v1602
        %v1604 = vld [vmem:[%s10] sm:$0x1]
        %v1606 = vlaneseq
        %v1607 = vshrl.u32 %v1606, 7
        %v1608 = vsub.s32 0, %v1607
        %v1609 = vrot.slane %v1604, %v1608
        %v1611 = vmul.f32 %v1603, %v1609
        %v1612 = vld [vmem:[%s11] sm:$0x1]
        %v1614 = vlaneseq
        %v1615 = vshrl.u32 %v1614, 7
        %v1616 = vsub.s32 0, %v1615
        %v1617 = vrot.slane %v1612, %v1616
        %v1619 = vadd.f32 %v1611, %v1617
        %v1620 = vpack.c.bf16 %v1619, %v1619
        %v1621 = vld [vmem:[#allocation8] sm:$0xf]
        %v1622 = vld [vmem:[#allocation8 + $0x4] sm:$0xf]
        %v1623 = vld [vmem:[#allocation8 + $0x8] sm:$0xf]
        %v1624 = vld [vmem:[#allocation8 + $0xc] sm:$0xf]
        %v1625 = vld [vmem:[%s13] sm:$0x1]
        %v1627 = vlaneseq
        %v1628 = vshrl.u32 %v1627, 7
        %v1629 = vsub.s32 0, %v1628
        %v1630 = vrot.slane %v1625, %v1629
        %v1636 = vunpack.c.l.b16 %v1621
        %v1637 = vunpack.c.l.b16 %v1622
        %v1638 = vunpack.c.l.b16 %v1623
        %v1639 = vunpack.c.l.b16 %v1624
        %v1640 = vpack.c.b16 %v1637, %v1636
        %v1641 = vpack.c.b16 %v1639, %v1638
        %v1645 = vsel %vm715, %v1620, 0
        %1647 = vmatprep.subr.bf16.mxu0 0
        %1648 = vmatpush1.bf16.msra.mxu0 0
        %1649 = vmatprep.subr.bf16.mxu0 0
        %1650 = vmatpush1.bf16.msra.mxu0 0
        %1651 = vmatprep.subr.bf16.mxu0 0
        %1652 = vmatpush1.bf16.msra.mxu0 0
        %1653 = vmatprep.subr.bf16.mxu0 0
        %1654 = vmatpush1.bf16.msra.mxu0 0
        %1655 = vmatprep.subr.bf16.mxu0 0
        %1656 = vmatpush1.bf16.msra.mxu0 0
        %1657 = vmatprep.subr.bf16.mxu0 0
        %1658 = vmatpush1.bf16.msra.mxu0 0
        %1659 = vmatprep.subr.bf16.mxu0 0
        %1660 = vmatpush1.bf16.msra.mxu0 %v1641
        %1661 = vmatprep.subr.bf16.mxu0 0
        %1662 = vmatpush1.bf16.msra.mxu0 %v1640
        %1663 = vmatprep.subr.bf16.mxu0 0
        %1664 = vmatpush2.bf16.msra.mxu0 0
        %1665 = vmatprep.subr.bf16.mxu0 0
        %1666 = vmatpush2.bf16.msra.mxu0 0
        %1667 = vmatprep.subr.bf16.mxu0 0
        %1668 = vmatpush2.bf16.msra.mxu0 0
        %1669 = vmatprep.subr.bf16.mxu0 0
        %1670 = vmatpush2.bf16.msra.mxu0 0
        %1671 = vmatprep.subr.bf16.mxu0 0
        %1672 = vmatpush2.bf16.msra.mxu0 0
        %1673 = vmatprep.subr.bf16.mxu0 0
        %1674 = vmatpush2.bf16.msra.mxu0 0
        %1675 = vmatprep.subr.bf16.mxu0 0
        %1676 = vmatpush2.bf16.msra.mxu0 0
        %1677 = vmatprep.subr.bf16.mxu0 0
        %1678 = vmatpush2.bf16.msra.mxu0 0
        %1679 = vmatprep.mubr.bf16.mxu0 0
        %1680 = vmatmul.mubr.bf16.gmra.mxu0 %v1645
        %v1681 = vpop.f32.mrf.mxu0
        %v1682 = vadd.f32 %v1630, %v1681
        %v1683 = vpop.f32.mrf.mxu0
        %v1684 = vpop.f32.mrf.mxu0
        %v1685 = vpop.f32.mrf.mxu0
        %1686 = vdwg.mxu0
        %v1687 = vmax.f32 %v1682, 0.0
        %v1688 = vpack.c.bf16 %v1687, %v1687
        %v1689 = vld [vmem:[%s14] sm:$0xf]
        %v1690 = vld [vmem:[%s14 + $0x4] sm:$0xf]
        %v1691 = vld [vmem:[%s14 + $0x8] sm:$0xf]
        %v1692 = vld [vmem:[%s14 + $0xc] sm:$0xf]
        %v1693 = vld [vmem:[%s14 + $0x10] sm:$0xf]
        %v1694 = vld [vmem:[%s14 + $0x14] sm:$0xf]
        %v1695 = vld [vmem:[%s14 + $0x18] sm:$0xf]
        %v1696 = vld [vmem:[%s14 + $0x1c] sm:$0xf]
        %v1697 = vld [vmem:[%s15] sm:$0x1]
        %v1699 = vlaneseq
        %v1700 = vshrl.u32 %v1699, 7
        %v1701 = vsub.s32 0, %v1700
        %v1702 = vrot.slane %v1697, %v1701
        %v1712 = vunpack.c.l.b16 %v1689
        %v1713 = vunpack.c.l.b16 %v1690
        %v1714 = vunpack.c.l.b16 %v1691
        %v1715 = vunpack.c.l.b16 %v1692
        %v1716 = vunpack.c.l.b16 %v1693
        %v1717 = vunpack.c.l.b16 %v1694
        %v1718 = vunpack.c.l.b16 %v1695
        %v1719 = vunpack.c.l.b16 %v1696
        %v1720 = vpack.c.b16 %v1713, %v1712
        %v1721 = vpack.c.b16 %v1715, %v1714
        %v1722 = vpack.c.b16 %v1717, %v1716
        %v1723 = vpack.c.b16 %v1719, %v1718
        %vm1728 = vcmask 523264
        %v1730 = vsel %vm1728, %v1688, 0
        %1732 = vmatprep.subr.bf16.mxu0 0
        %1733 = vmatpush1.bf16.msra.mxu0 0
        %1734 = vmatprep.subr.bf16.mxu0 0
        %1735 = vmatpush1.bf16.msra.mxu0 0
        %1736 = vmatprep.subr.bf16.mxu0 0
        %1737 = vmatpush1.bf16.msra.mxu0 0
        %1738 = vmatprep.subr.bf16.mxu0 0
        %1739 = vmatpush1.bf16.msra.mxu0 0
        %1740 = vmatprep.subr.bf16.mxu0 0
        %1741 = vmatpush1.bf16.msra.mxu0 %v1723
        %1742 = vmatprep.subr.bf16.mxu0 0
        %1743 = vmatpush1.bf16.msra.mxu0 %v1722
        %1744 = vmatprep.subr.bf16.mxu0 0
        %1745 = vmatpush1.bf16.msra.mxu0 %v1721
        %1746 = vmatprep.subr.bf16.mxu0 0
        %1747 = vmatpush1.bf16.msra.mxu0 %v1720
        %1748 = vmatprep.subr.bf16.mxu0 0
        %1749 = vmatpush2.bf16.msra.mxu0 0
        %1750 = vmatprep.subr.bf16.mxu0 0
        %1751 = vmatpush2.bf16.msra.mxu0 0
        %1752 = vmatprep.subr.bf16.mxu0 0
        %1753 = vmatpush2.bf16.msra.mxu0 0
        %1754 = vmatprep.subr.bf16.mxu0 0
        %1755 = vmatpush2.bf16.msra.mxu0 0
        %1756 = vmatprep.subr.bf16.mxu0 0
        %1757 = vmatpush2.bf16.msra.mxu0 0
        %1758 = vmatprep.subr.bf16.mxu0 0
        %1759 = vmatpush2.bf16.msra.mxu0 0
        %1760 = vmatprep.subr.bf16.mxu0 0
        %1761 = vmatpush2.bf16.msra.mxu0 0
        %1762 = vmatprep.subr.bf16.mxu0 0
        %1763 = vmatpush2.bf16.msra.mxu0 0
        %1764 = vmatprep.mubr.bf16.mxu0 0
        %1765 = vmatmul.mubr.bf16.gmra.mxu0 %v1730
        %v1766 = vpop.f32.mrf.mxu0
        %v1767 = vadd.f32 %v1702, %v1766
        %v1768 = vpop.f32.mrf.mxu0
        %v1769 = vpop.f32.mrf.mxu0
        %v1770 = vpop.f32.mrf.mxu0
        %1771 = vdwg.mxu0
        %v1772 = vadd.f32 %v1767, %v1619
        %v1773 = vsel %vm715, %v1772, 0.0
        %1774 = vadd.xlane.f32.xlu0 %v1773
        %v1775 = vpop.xlane.xlu0 %1774
        %v1776 = vmul.f32 %v1775, %v1593
        %v1777 = vsub.f32 %v1772, %v1776
        %v1778 = vmul.f32 %v1777, %v1777
        %v1779 = vsel %vm715, %v1778, 0.0
        %1780 = vadd.xlane.f32.xlu0 %v1779
        %v1781 = vpop.xlane.xlu0 %1780
        %v1782 = vmul.f32 %v1781, %v1593
        %v1783 = vadd.f32 %v1782, 1e-05
        %v1784 = vrsqrt.pop %v1783
        %v1785 = vmul.f32 %v1777, %v1784
        %v1786 = vld [vmem:[%s16] sm:$0x1]
        %v1788 = vlaneseq
        %v1789 = vshrl.u32 %v1788, 7
        %v1790 = vsub.s32 0, %v1789
        %v1791 = vrot.slane %v1786, %v1790
        %v1793 = vmul.f32 %v1785, %v1791
        %v1794 = vld [vmem:[%s17] sm:$0x1]
        %v1796 = vlaneseq
        %v1797 = vshrl.u32 %v1796, 7
        %v1798 = vsub.s32 0, %v1797
        %v1799 = vrot.slane %v1794, %v1798
        %v1801 = vadd.f32 %v1793, %v1799
        %1802 = vst.msk [vmem:[%s675] sm:$0xff] %vm715, %v1801
        %s1803 = sand.u32 %s438, 1
        %s1804 = scalar_lea.sflag [#allocation4], %s1803
        %s1805 = sand.u32 %s438, 1
        %s1806 = smul.addr %s1805, 8
        %s1807 = scalar_lea.vmem [#allocation10], %s1806
        %s1808 = sand.u32 %s464, 1
        %s1809 = scalar_lea.sflag [#allocation12], %s1808
        %s1810 = sand.u32 %s464, 1
        %s1811 = smul.addr %s1810, 32
        %s1812 = scalar_lea.vmem [#allocation11], %s1811
        // Predicated region
        $region109: #{tpu_custom_call.1} parent=91 // pred_check
          %p1813 = pneg %p448
        $region110: #{tpu_custom_call.1} parent=91 // pred_check_branch
          %1815 = sbr.rel (%p1813) target = $region112
        $region111: #{tpu_custom_call.1} parent=91 // pred_region
          %s1817 = ssub.s32 128, 128
          %1818 = vsyncadd %s1804, %s1817
          %s1819 = smul.addr %s42, 128
          %s1820 = scalar_lea.hbm %s18, %s1819
          %s1822 = sshll.u32 %s1807, 4
          %s1823 = int_to_ptr.vmem [resolvable:$true] %s1822
          %1825 = dma.vmem_to_hbm [thread:$0]  %s1823, 128, %s1820, %s1804
        $region112: #{tpu_custom_call.1} parent=91 // pred_fallthru
          _
        // Predicated region
        $region113: #{tpu_custom_call.1} parent=91 // pred_check
          %p1826 = pneg %p474
        $region114: #{tpu_custom_call.1} parent=91 // pred_check_branch
          %1828 = sbr.rel (%p1826) target = $region116
        $region115: #{tpu_custom_call.1} parent=91 // pred_region
          %s1830 = ssub.s32 512, 512
          %1831 = vsyncadd %s1809, %s1830
          %s1832 = smul.addr %s42, 4
          %s1833 = smul.addr %s1832, 128
          %s1834 = scalar_lea.hbm %s19, %s1833
          %s1835 = sshll.u32 %s1812, 4
          %s1836 = int_to_ptr.vmem [resolvable:$true] %s1835
          %1841 = dma.vmem_to_hbm [thread:$0]  %s1836, 512, %s1834, %s1809, 128, 128, 8
        $region116: #{tpu_custom_call.1} parent=91 // pred_fallthru
          _
      $region92: #{tpu_custom_call.1} parent=5 // pred_fallthru
        _
      %p1842 = scmp.le.s32.totalorder 2, %s37
      // Predicated region
      $region117: #{tpu_custom_call.1} parent=5 // pred_check
        %p1843 = pneg %p1842
      $region118: #{tpu_custom_call.1} parent=5 // pred_check_branch
        %1845 = sbr.rel (%p1843) target = $region120
      $region119: #{tpu_custom_call.1} parent=5 // pred_region
        %s1846 = ssub.s32 %s37, 2
        // Predicated region
        $region121: #{tpu_custom_call.1} parent=119 // pred_check
          %p1847 = pneg %p454
        $region122: #{tpu_custom_call.1} parent=119 // pred_check_branch
          %1849 = sbr.rel (%p1847) target = $region124
        $region123: #{tpu_custom_call.1} parent=119 // pred_region
          %s1850 = sand.u32 %s439, 1
          %s1851 = scalar_lea.sflag [#allocation4], %s1850
          %s1852 = sand.u32 %s439, 1
          %s1853 = smul.addr %s1852, 8
          %s1854 = scalar_lea.vmem [#allocation10], %s1853
          %1855 = dma.done %s1851, 128
        $region124: #{tpu_custom_call.1} parent=119 // pred_fallthru
          _
        // Predicated region
        $region125: #{tpu_custom_call.1} parent=119 // pred_check
          %p1856 = pneg %p480
        $region126: #{tpu_custom_call.1} parent=119 // pred_check_branch
          %1858 = sbr.rel (%p1856) target = $region128
        $region127: #{tpu_custom_call.1} parent=119 // pred_region
          %s1859 = sand.u32 %s465, 1
          %s1860 = scalar_lea.sflag [#allocation12], %s1859
          %s1861 = sand.u32 %s465, 1
          %s1862 = smul.addr %s1861, 32
          %s1863 = scalar_lea.vmem [#allocation11], %s1862
          %1864 = dma.done %s1860, 512
        $region128: #{tpu_custom_call.1} parent=119 // pred_fallthru
          _
      $region120: #{tpu_custom_call.1} parent=5 // pred_fallthru
        _
    $region6: #{tpu_custom_call.1} parent=1 // loop_footer
      %s41 = sadd.s32 1, %s37
    $region7: #{tpu_custom_call.1} parent=1 // loop_footer_branch
      %36 = sbr.rel target = $region3
    $region8: #{tpu_custom_call.1} parent=1 // loop_exit
      _
    %1865 = vsyncpa [#allocation3], 1
    %s1866 = scalar_lea.sflag [#allocation3], 1
    %1867 = vsyncpa %s1866, 1
    %1868 = vsyncpa [#allocation6], 1
    %1869 = vsyncpa [#allocation9], 1
    %1870 = vsyncpa [#allocation4], 1
    %s1871 = scalar_lea.sflag [#allocation4], 1
    %1872 = vsyncpa %s1871, 1
    %1873 = vsyncpa [#allocation12], 1
    %s1874 = scalar_lea.sflag [#allocation12], 1
    %1875 = vsyncpa %s1874, 1

</llo_original>
